<compile_context>
chip_gen: v7x
topology: tpu7x:2x2x1
jax: 0.10.0
libtpu: 0.0.40
codegen_flags: <defaults>
</compile_context>

<pallas_src>
import functools

import jax
import jax.numpy as jnp
from jax import lax
from jax.experimental import pallas as pl
from jax.experimental.pallas import tpu as pltpu


# A @ B^T expressed as "contract last dims of both operands": native MXU path, no XLU transpose.
_CONTRACT_LAST = (((1,), (1,)), ((), ()))


# ----------------------------------------------------------------------------
# Fused Pallas kernel: 4 projections + edge biaffine + label biaffine
# ----------------------------------------------------------------------------
def _scorer_kernel(x_ref, wcat_ref, ucat_ref, edge_ref, label_ref,
                   *, n, dp, n_labels, bps):
    """One grid step = `bps` batch elements.

    x_ref     : (bps*n, Fp)        [features | 1 | 0-pad] rows (batch folded into rows)
    wcat_ref  : (Fp, 4*dp)         [edge_head | label_head | edge_dep | label_dep]
    ucat_ref  : ((1+L)*dp, 2*dp)   row-block 0 = U_edge (vs edge-dep cols 0:dp),
                                   row-block 1+l = U_label[l] (vs label-dep cols dp:2dp)
    edge_ref  : (bps, 1, n*n)      lane-dense flat per-batch rows
    label_ref : (bps, 1, L*n*n)
    """
    f32 = jnp.float32
    cdt = ucat_ref.dtype  # MXU input dtype (f32, or bf16 when enabled)

    # One wide projection matmul for all four FNNs (biases + constant-1 column folded in).
    proj = jnp.dot(x_ref[...], wcat_ref[...], preferred_element_type=f32)   # (bps*n, 4*dp)

    # Lane-dense biaffine intermediate for edge AND all labels in ONE matmul:
    #   t[r, k*dp + a] = dep_k[r] . U_k[a, :]   (k=0 edge, k=1+l labels)
    deps = proj[:, 2 * dp:4 * dp].astype(cdt)                                # [ed | ld]
    t = lax.dot_general(deps, ucat_ref[...], _CONTRACT_LAST,
                        preferred_element_type=f32)                          # (bps*n, (1+L)*dp)

    def flat_row(m):
        # (n, n) -> (1, n*n) using lane-dim concatenation of static row slices
        # (avoids relayout-risky (n,n)->(n*n,) reshapes in-kernel).
        return jnp.concatenate([m[i:i + 1, :] for i in range(n)], axis=1)

    for b in range(bps):  # tiny static unroll over batch elements in this step
        r0 = b * n
        eh = proj[r0:r0 + n, 0 * dp:1 * dp]      # 128-aligned slices
        lh = proj[r0:r0 + n, 1 * dp:2 * dp]
        tb = t[r0:r0 + n, :]

        edge = lax.dot_general(eh, tb[:, 0:dp], _CONTRACT_LAST,
                               preferred_element_type=f32)                   # (n, n)
        edge_ref[b] = flat_row(edge)                                         # (1, n*n)

        pieces = []
        for l in range(n_labels):  # small static unroll (L=4 here)
            lab = lax.dot_general(lh, tb[:, (1 + l) * dp:(2 + l) * dp],
                                  _CONTRACT_LAST, preferred_element_type=f32)  # (n, n)
            pieces.append(flat_row(lab))
        label_ref[b] = jnp.concatenate(pieces, axis=1)                       # (1, L*n*n)


@functools.partial(jax.jit, static_argnames=("n", "n_labels", "batch_grid"))
def scorer_forward(x1p, wcat, ucat, *, n, n_labels, batch_grid=False):
    """x1p: (B*N, Fp). Returns edge (B,N,N) f32 and label (B,L,N,N) f32."""
    bn, fp = x1p.shape
    b = bn // n
    dp = ucat.shape[1] // 2
    # Guard the padding invariants the kernel relies on.
    assert dp % 128 == 0 and fp % 128 == 0
    assert ucat.shape[0] == (1 + n_labels) * dp
    assert wcat.shape == (fp, 4 * dp)
    assert bn == b * n and n % 8 == 0

    # Default: one grid step, batch folded into MXU rows (best for single-TC v5e/v6e).
    # batch_grid=True: grid=(B,) "parallel" so v7x's two TensorCores split the batch.
    steps = b if batch_grid else 1
    bps = b // steps

    kernel = functools.partial(_scorer_kernel, n=n, dp=dp, n_labels=n_labels, bps=bps)

    edge_flat, label_flat = pl.pallas_call(
        kernel,
        out_shape=(
            jax.ShapeDtypeStruct((b, 1, n * n), jnp.float32),
            jax.ShapeDtypeStruct((b, 1, n_labels * n * n), jnp.float32),
        ),
        grid=(steps,),
        in_specs=[
            pl.BlockSpec((bps * n, fp), lambda i: (i, 0)),   # activations per step
            pl.BlockSpec(wcat.shape, lambda i: (0, 0)),      # grid-invariant weights
            pl.BlockSpec(ucat.shape, lambda i: (0, 0)),
        ],
        out_specs=(
            pl.BlockSpec((bps, 1, n * n), lambda i: (i, 0, 0)),
            pl.BlockSpec((bps, 1, n_labels * n * n), lambda i: (i, 0, 0)),
        ),
        compiler_params=pltpu.CompilerParams(
            dimension_semantics=("parallel",),
            vmem_limit_bytes=32 * 1024 * 1024,
        ),
    )(x1p, wcat, ucat)

    return (edge_flat.reshape(b, n, n),
            label_flat.reshape(b, n_labels, n, n))


# ----------------------------------------------------------------------------
# Parameter construction / host-side prep
# ----------------------------------------------------------------------------
def _round_up(x, m):
    return (x + m - 1) // m * m


def init_params(key, fnn_input, dim_mlp, n_labels, scale=0.1):
    """Deterministic synthetic params. Linear weights stored as (in, out)."""
    params = {}
    for name in ("edge_head", "edge_dep", "label_head", "label_dep"):
        key, kw, kb = jax.random.split(key, 3)
        params[name] = (
            jax.random.normal(kw, (fnn_input, dim_mlp), jnp.float32) * scale,
            jax.random.normal(kb, (dim_mlp,), jnp.float32) * scale,
        )
    key, ke, kl = jax.random.split(key, 3)
    d1 = dim_mlp + 1  # bias-augmented biaffine dimension
    params["U_edge"] = jax.random.normal(ke, (d1, d1), jnp.float32) * scale
    params["U_label"] = jax.random.normal(kl, (n_labels, d1, d1), jnp.float32) * scale
    return params


def prepare_params(params, fnn_input, dim_mlp, n_labels, use_bf16=False):
    """Fold biases + constant-1 biaffine column into the projections, concat the
    four projections into one weight, pad both the feature axis (F+1) and the
    biaffine axis (dim_mlp+1) to multiples of 128, and fold the edge biaffine
    into the label U stack (block-structured ucat)."""
    d1 = dim_mlp + 1
    dp = _round_up(d1, 128)
    fp = _round_up(fnn_input + 1, 128)
    dtype = jnp.bfloat16 if use_bf16 else jnp.float32

    def augment(name):
        w, b = params[name]
        f = w.shape[0]
        wa = jnp.zeros((fp, dp), jnp.float32)
        wa = wa.at[:f, :dim_mlp].set(w)
        wa = wa.at[f, :dim_mlp].set(b)     # bias row (picked up by the appended 1)
        wa = wa.at[f, dim_mlp].set(1.0)    # produces the constant-1 biaffine column
        return wa

    # Column order matters for the kernel: [edge_head | label_head | edge_dep | label_dep]
    wcat = jnp.concatenate(
        [augment(nm) for nm in ("edge_head", "label_head", "edge_dep", "label_dep")],
        axis=1)                                                    # (Fp, 4*dp)

    # ucat ((1+L)*dp, 2*dp): edge block contracts against the edge-dep half (cols 0:dp),
    # label block l contracts against the label-dep half (cols dp:2dp).
    ucat = jnp.zeros(((1 + n_labels) * dp, 2 * dp), jnp.float32)
    ucat = ucat.at[:d1, :d1].set(params["U_edge"])
    for l in range(n_labels):
        r = (1 + l) * dp
        ucat = ucat.at[r:r + d1, dp:dp + d1].set(params["U_label"][l])

    return wcat.astype(dtype), ucat.astype(dtype)


def scorer_apply(lstm_outputs, wcat, ucat, attended_outputs=None, batch_grid=False):
    """Matches Scorer.forward (factorized). Optional attended_outputs is concatenated
    on the feature dim before scoring (weights must be sized for it)."""
    x = lstm_outputs
    if attended_outputs is not None:
        x = jnp.concatenate([x, attended_outputs], axis=2)
    b, n, f = x.shape
    fp = wcat.shape[0]
    dp = ucat.shape[1] // 2
    n_labels = ucat.shape[0] // dp - 1
    # [x | 1 | 0-pad] rows, batch folded into rows, lane-aligned feature axis.
    x1p = jnp.zeros((b * n, fp), wcat.dtype)
    x1p = x1p.at[:, :f].set(x.reshape(b * n, f).astype(wcat.dtype))
    x1p = x1p.at[:, f].set(1.0)
    return scorer_forward(x1p, wcat, ucat, n=n, n_labels=n_labels, batch_grid=batch_grid)


# ----------------------------------------------------------------------------
# Pure-JAX reference matching the PyTorch forward
# ----------------------------------------------------------------------------
def scorer_ref(lstm_outputs, params, attended_outputs=None):
    x = lstm_outputs
    if attended_outputs is not None:
        x = jnp.concatenate([x, attended_outputs], axis=2)
    ones = jnp.ones(x.shape[:-1] + (1,), x.dtype)

    def head(name):
        w, b = params[name]
        return jnp.concatenate([x @ w + b, ones], axis=-1)

    eh, ed, lh, ld = (head(nm) for nm in ("edge_head", "edge_dep",
                                          "label_head", "label_dep"))
    edge = jnp.einsum("bia,ac,bjc->bij", eh, params["U_edge"], ed)
    label = jnp.einsum("bia,lac,bjc->blij", lh, params["U_label"], ld)
    return edge, label


if __name__ == "__main__":
    # Small shapes consistent with the module: batch=2, seq=8,
    # hidden_lstm=16 -> fnn_input=32 (lonely_only=True), dim_mlp=32, n_labels=4.
    B, N = 2, 8
    HIDDEN_LSTM, DIM_MLP, N_LABELS = 16, 32, 4
    FNN_INPUT = 2 * HIDDEN_LSTM

    key = jax.random.PRNGKey(0)
    k_x, k_p = jax.random.split(key)
    lstm_outputs = jax.random.normal(k_x, (B, N, FNN_INPUT), jnp.float32)
    params = init_params(k_p, FNN_INPUT, DIM_MLP, N_LABELS)
    wcat, ucat = prepare_params(params, FNN_INPUT, DIM_MLP, N_LABELS)

    edge_ref_v, label_ref_v = scorer_ref(lstm_outputs, params)

    # Default path: collapsed batch grid (single step) — best on single-TC v5e/v6e.
    edge, label = scorer_apply(lstm_outputs, wcat, ucat)
    edge, label = jax.block_until_ready((edge, label))
    assert edge.shape == (B, N, N) and label.shape == (B, N_LABELS, N, N)
    assert jnp.allclose(edge, edge_ref_v, atol=1e-3, rtol=1e-3), "edge mismatch"
    assert jnp.allclose(label, label_ref_v, atol=1e-3, rtol=1e-3), "label mismatch"

    # v7x path: grid=(B,) "parallel" so both TensorCores take a batch element.
    edge2, label2 = scorer_apply(lstm_outputs, wcat, ucat, batch_grid=True)
    edge2, label2 = jax.block_until_ready((edge2, label2))
    assert jnp.allclose(edge2, edge_ref_v, atol=1e-3, rtol=1e-3), "edge mismatch (batch_grid)"
    assert jnp.allclose(label2, label_ref_v, atol=1e-3, rtol=1e-3), "label mismatch (batch_grid)"

    print("KERNEL_OK")
</pallas_src>

<mosaic_0001>
module attributes {stable_mosaic.version = 11 : i64} {
  func.func @_scorer_kernel(%arg0: i32, %arg1: memref<16x128xf32, #tpu.memory_space<vmem>>, %arg2: memref<128x512xf32, #tpu.memory_space<vmem>>, %arg3: memref<640x256xf32, #tpu.memory_space<vmem>>, %arg4: memref<2x1x64xf32, #tpu.memory_space<vmem>>, %arg5: memref<2x1x256xf32, #tpu.memory_space<vmem>>) attributes {dimension_semantics = [#tpu.dimension_semantics<parallel>], iteration_bounds = array<i64: 1>, scalar_prefetch = 0 : i64, scratch_operands = 0 : i64, tpu.core_type = #tpu.core_type<tc>, window_params = [{transform_indices = @transform_0, window_bounds = array<i64: 16, 128>}, {pipeline_mode = #tpu.pipeline_mode<synchronous>, transform_indices = @transform_1, window_bounds = array<i64: 128, 512>}, {pipeline_mode = #tpu.pipeline_mode<synchronous>, transform_indices = @transform_2, window_bounds = array<i64: 640, 256>}, {transform_indices = @transform_3, window_bounds = array<i64: 2, 1, 64>}, {transform_indices = @transform_4, window_bounds = array<i64: 2, 1, 256>}]} {
    %c0 = arith.constant 0 : index
    %c0_0 = arith.constant 0 : index
    %0 = vector.load %arg1[%c0, %c0_0] : memref<16x128xf32, #tpu.memory_space<vmem>>, vector<16x128xf32>
    %c0_1 = arith.constant 0 : index
    %c0_2 = arith.constant 0 : index
    %1 = vector.load %arg2[%c0_1, %c0_2] : memref<128x512xf32, #tpu.memory_space<vmem>>, vector<128x512xf32>
    %cst = arith.constant dense<0.000000e+00> : vector<16x512xf32>
    %2 = tpu.matmul %0, %1, %cst {dimension_numbers = #tpu.dot_dimension_numbers<[1], [0], [0], [1], [0, 0, 1, 1], [], []>} : vector<16x128xf32>, vector<128x512xf32>, vector<16x512xf32> -> vector<16x512xf32>
    %3 = vector.extract_strided_slice %2 {offsets = [0, 256], sizes = [16, 256], strides = [1, 1]} : vector<16x512xf32> to vector<16x256xf32>
    %c0_3 = arith.constant 0 : index
    %c0_4 = arith.constant 0 : index
    %4 = vector.load %arg3[%c0_3, %c0_4] : memref<640x256xf32, #tpu.memory_space<vmem>>, vector<640x256xf32>
    %cst_5 = arith.constant dense<0.000000e+00> : vector<16x640xf32>
    %5 = tpu.matmul %3, %4, %cst_5 {dimension_numbers = #tpu.dot_dimension_numbers<[1], [1], [0], [0], [0, 0, 1, 0], [], []>} : vector<16x256xf32>, vector<640x256xf32>, vector<16x640xf32> -> vector<16x640xf32>
    %6 = vector.extract_strided_slice %2 {offsets = [0, 0], sizes = [8, 128], strides = [1, 1]} : vector<16x512xf32> to vector<8x128xf32>
    %7 = vector.extract_strided_slice %2 {offsets = [0, 128], sizes = [8, 128], strides = [1, 1]} : vector<16x512xf32> to vector<8x128xf32>
    %8 = vector.extract_strided_slice %5 {offsets = [0, 0], sizes = [8, 640], strides = [1, 1]} : vector<16x640xf32> to vector<8x640xf32>
    %9 = vector.extract_strided_slice %8 {offsets = [0, 0], sizes = [8, 128], strides = [1, 1]} : vector<8x640xf32> to vector<8x128xf32>
    %cst_6 = arith.constant dense<0.000000e+00> : vector<8x8xf32>
    %10 = tpu.matmul %6, %9, %cst_6 {dimension_numbers = #tpu.dot_dimension_numbers<[1], [1], [0], [0], [0, 0, 1, 0], [], []>} : vector<8x128xf32>, vector<8x128xf32>, vector<8x8xf32> -> vector<8x8xf32>
    %11 = vector.extract_strided_slice %10 {offsets = [0, 0], sizes = [1, 8], strides = [1, 1]} : vector<8x8xf32> to vector<1x8xf32>
    %12 = vector.extract_strided_slice %10 {offsets = [1, 0], sizes = [1, 8], strides = [1, 1]} : vector<8x8xf32> to vector<1x8xf32>
    %13 = vector.extract_strided_slice %10 {offsets = [2, 0], sizes = [1, 8], strides = [1, 1]} : vector<8x8xf32> to vector<1x8xf32>
    %14 = vector.extract_strided_slice %10 {offsets = [3, 0], sizes = [1, 8], strides = [1, 1]} : vector<8x8xf32> to vector<1x8xf32>
    %15 = vector.extract_strided_slice %10 {offsets = [4, 0], sizes = [1, 8], strides = [1, 1]} : vector<8x8xf32> to vector<1x8xf32>
    %16 = vector.extract_strided_slice %10 {offsets = [5, 0], sizes = [1, 8], strides = [1, 1]} : vector<8x8xf32> to vector<1x8xf32>
    %17 = vector.extract_strided_slice %10 {offsets = [6, 0], sizes = [1, 8], strides = [1, 1]} : vector<8x8xf32> to vector<1x8xf32>
    %18 = vector.extract_strided_slice %10 {offsets = [7, 0], sizes = [1, 8], strides = [1, 1]} : vector<8x8xf32> to vector<1x8xf32>
    %19 = tpu.concatenate %11, %12, %13, %14, %15, %16, %17, %18 in 1 : vector<1x8xf32>, vector<1x8xf32>, vector<1x8xf32>, vector<1x8xf32>, vector<1x8xf32>, vector<1x8xf32>, vector<1x8xf32>, vector<1x8xf32> -> vector<1x64xf32>
    %c0_7 = arith.constant 0 : index
    %c0_8 = arith.constant 0 : index
    %c0_9 = arith.constant 0 : index
    %20 = vector.load %arg4[%c0_7, %c0_8, %c0_9] : memref<2x1x64xf32, #tpu.memory_space<vmem>>, vector<1x1x64xf32>
    %21 = vector.shape_cast %20 : vector<1x1x64xf32> to vector<1x64xf32>
    %22 = vector.shape_cast %19 : vector<1x64xf32> to vector<1x1x64xf32>
    tpu.vector_store %arg4[%c0_7, %c0_8, %c0_9], %22 {strides = array<i32>} : memref<2x1x64xf32, #tpu.memory_space<vmem>>, vector<1x1x64xf32>,
    %23 = vector.extract_strided_slice %8 {offsets = [0, 128], sizes = [8, 128], strides = [1, 1]} : vector<8x640xf32> to vector<8x128xf32>
    %cst_10 = arith.constant dense<0.000000e+00> : vector<8x8xf32>
    %24 = tpu.matmul %7, %23, %cst_10 {dimension_numbers = #tpu.dot_dimension_numbers<[1], [1], [0], [0], [0, 0, 1, 0], [], []>} : vector<8x128xf32>, vector<8x128xf32>, vector<8x8xf32> -> vector<8x8xf32>
    %25 = vector.extract_strided_slice %24 {offsets = [0, 0], sizes = [1, 8], strides = [1, 1]} : vector<8x8xf32> to vector<1x8xf32>
    %26 = vector.extract_strided_slice %24 {offsets = [1, 0], sizes = [1, 8], strides = [1, 1]} : vector<8x8xf32> to vector<1x8xf32>
    %27 = vector.extract_strided_slice %24 {offsets = [2, 0], sizes = [1, 8], strides = [1, 1]} : vector<8x8xf32> to vector<1x8xf32>
    %28 = vector.extract_strided_slice %24 {offsets = [3, 0], sizes = [1, 8], strides = [1, 1]} : vector<8x8xf32> to vector<1x8xf32>
    %29 = vector.extract_strided_slice %24 {offsets = [4, 0], sizes = [1, 8], strides = [1, 1]} : vector<8x8xf32> to vector<1x8xf32>
    %30 = vector.extract_strided_slice %24 {offsets = [5, 0], sizes = [1, 8], strides = [1, 1]} : vector<8x8xf32> to vector<1x8xf32>
    %31 = vector.extract_strided_slice %24 {offsets = [6, 0], sizes = [1, 8], strides = [1, 1]} : vector<8x8xf32> to vector<1x8xf32>
    %32 = vector.extract_strided_slice %24 {offsets = [7, 0], sizes = [1, 8], strides = [1, 1]} : vector<8x8xf32> to vector<1x8xf32>
    %33 = tpu.concatenate %25, %26, %27, %28, %29, %30, %31, %32 in 1 : vector<1x8xf32>, vector<1x8xf32>, vector<1x8xf32>, vector<1x8xf32>, vector<1x8xf32>, vector<1x8xf32>, vector<1x8xf32>, vector<1x8xf32> -> vector<1x64xf32>
    %34 = vector.extract_strided_slice %8 {offsets = [0, 256], sizes = [8, 128], strides = [1, 1]} : vector<8x640xf32> to vector<8x128xf32>
    %cst_11 = arith.constant dense<0.000000e+00> : vector<8x8xf32>
    %35 = tpu.matmul %7, %34, %cst_11 {dimension_numbers = #tpu.dot_dimension_numbers<[1], [1], [0], [0], [0, 0, 1, 0], [], []>} : vector<8x128xf32>, vector<8x128xf32>, vector<8x8xf32> -> vector<8x8xf32>
    %36 = vector.extract_strided_slice %35 {offsets = [0, 0], sizes = [1, 8], strides = [1, 1]} : vector<8x8xf32> to vector<1x8xf32>
    %37 = vector.extract_strided_slice %35 {offsets = [1, 0], sizes = [1, 8], strides = [1, 1]} : vector<8x8xf32> to vector<1x8xf32>
    %38 = vector.extract_strided_slice %35 {offsets = [2, 0], sizes = [1, 8], strides = [1, 1]} : vector<8x8xf32> to vector<1x8xf32>
    %39 = vector.extract_strided_slice %35 {offsets = [3, 0], sizes = [1, 8], strides = [1, 1]} : vector<8x8xf32> to vector<1x8xf32>
    %40 = vector.extract_strided_slice %35 {offsets = [4, 0], sizes = [1, 8], strides = [1, 1]} : vector<8x8xf32> to vector<1x8xf32>
    %41 = vector.extract_strided_slice %35 {offsets = [5, 0], sizes = [1, 8], strides = [1, 1]} : vector<8x8xf32> to vector<1x8xf32>
    %42 = vector.extract_strided_slice %35 {offsets = [6, 0], sizes = [1, 8], strides = [1, 1]} : vector<8x8xf32> to vector<1x8xf32>
    %43 = vector.extract_strided_slice %35 {offsets = [7, 0], sizes = [1, 8], strides = [1, 1]} : vector<8x8xf32> to vector<1x8xf32>
    %44 = tpu.concatenate %36, %37, %38, %39, %40, %41, %42, %43 in 1 : vector<1x8xf32>, vector<1x8xf32>, vector<1x8xf32>, vector<1x8xf32>, vector<1x8xf32>, vector<1x8xf32>, vector<1x8xf32>, vector<1x8xf32> -> vector<1x64xf32>
    %45 = vector.extract_strided_slice %8 {offsets = [0, 384], sizes = [8, 128], strides = [1, 1]} : vector<8x640xf32> to vector<8x128xf32>
    %cst_12 = arith.constant dense<0.000000e+00> : vector<8x8xf32>
    %46 = tpu.matmul %7, %45, %cst_12 {dimension_numbers = #tpu.dot_dimension_numbers<[1], [1], [0], [0], [0, 0, 1, 0], [], []>} : vector<8x128xf32>, vector<8x128xf32>, vector<8x8xf32> -> vector<8x8xf32>
    %47 = vector.extract_strided_slice %46 {offsets = [0, 0], sizes = [1, 8], strides = [1, 1]} : vector<8x8xf32> to vector<1x8xf32>
    %48 = vector.extract_strided_slice %46 {offsets = [1, 0], sizes = [1, 8], strides = [1, 1]} : vector<8x8xf32> to vector<1x8xf32>
    %49 = vector.extract_strided_slice %46 {offsets = [2, 0], sizes = [1, 8], strides = [1, 1]} : vector<8x8xf32> to vector<1x8xf32>
    %50 = vector.extract_strided_slice %46 {offsets = [3, 0], sizes = [1, 8], strides = [1, 1]} : vector<8x8xf32> to vector<1x8xf32>
    %51 = vector.extract_strided_slice %46 {offsets = [4, 0], sizes = [1, 8], strides = [1, 1]} : vector<8x8xf32> to vector<1x8xf32>
    %52 = vector.extract_strided_slice %46 {offsets = [5, 0], sizes = [1, 8], strides = [1, 1]} : vector<8x8xf32> to vector<1x8xf32>
    %53 = vector.extract_strided_slice %46 {offsets = [6, 0], sizes = [1, 8], strides = [1, 1]} : vector<8x8xf32> to vector<1x8xf32>
    %54 = vector.extract_strided_slice %46 {offsets = [7, 0], sizes = [1, 8], strides = [1, 1]} : vector<8x8xf32> to vector<1x8xf32>
    %55 = tpu.concatenate %47, %48, %49, %50, %51, %52, %53, %54 in 1 : vector<1x8xf32>, vector<1x8xf32>, vector<1x8xf32>, vector<1x8xf32>, vector<1x8xf32>, vector<1x8xf32>, vector<1x8xf32>, vector<1x8xf32> -> vector<1x64xf32>
    %56 = vector.extract_strided_slice %8 {offsets = [0, 512], sizes = [8, 128], strides = [1, 1]} : vector<8x640xf32> to vector<8x128xf32>
    %cst_13 = arith.constant dense<0.000000e+00> : vector<8x8xf32>
    %57 = tpu.matmul %7, %56, %cst_13 {dimension_numbers = #tpu.dot_dimension_numbers<[1], [1], [0], [0], [0, 0, 1, 0], [], []>} : vector<8x128xf32>, vector<8x128xf32>, vector<8x8xf32> -> vector<8x8xf32>
    %58 = vector.extract_strided_slice %57 {offsets = [0, 0], sizes = [1, 8], strides = [1, 1]} : vector<8x8xf32> to vector<1x8xf32>
    %59 = vector.extract_strided_slice %57 {offsets = [1, 0], sizes = [1, 8], strides = [1, 1]} : vector<8x8xf32> to vector<1x8xf32>
    %60 = vector.extract_strided_slice %57 {offsets = [2, 0], sizes = [1, 8], strides = [1, 1]} : vector<8x8xf32> to vector<1x8xf32>
    %61 = vector.extract_strided_slice %57 {offsets = [3, 0], sizes = [1, 8], strides = [1, 1]} : vector<8x8xf32> to vector<1x8xf32>
    %62 = vector.extract_strided_slice %57 {offsets = [4, 0], sizes = [1, 8], strides = [1, 1]} : vector<8x8xf32> to vector<1x8xf32>
    %63 = vector.extract_strided_slice %57 {offsets = [5, 0], sizes = [1, 8], strides = [1, 1]} : vector<8x8xf32> to vector<1x8xf32>
    %64 = vector.extract_strided_slice %57 {offsets = [6, 0], sizes = [1, 8], strides = [1, 1]} : vector<8x8xf32> to vector<1x8xf32>
    %65 = vector.extract_strided_slice %57 {offsets = [7, 0], sizes = [1, 8], strides = [1, 1]} : vector<8x8xf32> to vector<1x8xf32>
    %66 = tpu.concatenate %58, %59, %60, %61, %62, %63, %64, %65 in 1 : vector<1x8xf32>, vector<1x8xf32>, vector<1x8xf32>, vector<1x8xf32>, vector<1x8xf32>, vector<1x8xf32>, vector<1x8xf32>, vector<1x8xf32> -> vector<1x64xf32>
    %67 = tpu.concatenate %33, %44, %55, %66 in 1 : vector<1x64xf32>, vector<1x64xf32>, vector<1x64xf32>, vector<1x64xf32> -> vector<1x256xf32>
    %c0_14 = arith.constant 0 : index
    %c0_15 = arith.constant 0 : index
    %c0_16 = arith.constant 0 : index
    %68 = vector.load %arg5[%c0_14, %c0_15, %c0_16] : memref<2x1x256xf32, #tpu.memory_space<vmem>>, vector<1x1x256xf32>
    %69 = vector.shape_cast %68 : vector<1x1x256xf32> to vector<1x256xf32>
    %70 = vector.shape_cast %67 : vector<1x256xf32> to vector<1x1x256xf32>
    tpu.vector_store %arg5[%c0_14, %c0_15, %c0_16], %70 {strides = array<i32>} : memref<2x1x256xf32, #tpu.memory_space<vmem>>, vector<1x1x256xf32>,
    %71 = vector.extract_strided_slice %2 {offsets = [8, 0], sizes = [8, 128], strides = [1, 1]} : vector<16x512xf32> to vector<8x128xf32>
    %72 = vector.extract_strided_slice %2 {offsets = [8, 128], sizes = [8, 128], strides = [1, 1]} : vector<16x512xf32> to vector<8x128xf32>
    %73 = vector.extract_strided_slice %5 {offsets = [8, 0], sizes = [8, 640], strides = [1, 1]} : vector<16x640xf32> to vector<8x640xf32>
    %74 = vector.extract_strided_slice %73 {offsets = [0, 0], sizes = [8, 128], strides = [1, 1]} : vector<8x640xf32> to vector<8x128xf32>
    %cst_17 = arith.constant dense<0.000000e+00> : vector<8x8xf32>
    %75 = tpu.matmul %71, %74, %cst_17 {dimension_numbers = #tpu.dot_dimension_numbers<[1], [1], [0], [0], [0, 0, 1, 0], [], []>} : vector<8x128xf32>, vector<8x128xf32>, vector<8x8xf32> -> vector<8x8xf32>
    %76 = vector.extract_strided_slice %75 {offsets = [0, 0], sizes = [1, 8], strides = [1, 1]} : vector<8x8xf32> to vector<1x8xf32>
    %77 = vector.extract_strided_slice %75 {offsets = [1, 0], sizes = [1, 8], strides = [1, 1]} : vector<8x8xf32> to vector<1x8xf32>
    %78 = vector.extract_strided_slice %75 {offsets = [2, 0], sizes = [1, 8], strides = [1, 1]} : vector<8x8xf32> to vector<1x8xf32>
    %79 = vector.extract_strided_slice %75 {offsets = [3, 0], sizes = [1, 8], strides = [1, 1]} : vector<8x8xf32> to vector<1x8xf32>
    %80 = vector.extract_strided_slice %75 {offsets = [4, 0], sizes = [1, 8], strides = [1, 1]} : vector<8x8xf32> to vector<1x8xf32>
    %81 = vector.extract_strided_slice %75 {offsets = [5, 0], sizes = [1, 8], strides = [1, 1]} : vector<8x8xf32> to vector<1x8xf32>
    %82 = vector.extract_strided_slice %75 {offsets = [6, 0], sizes = [1, 8], strides = [1, 1]} : vector<8x8xf32> to vector<1x8xf32>
    %83 = vector.extract_strided_slice %75 {offsets = [7, 0], sizes = [1, 8], strides = [1, 1]} : vector<8x8xf32> to vector<1x8xf32>
    %84 = tpu.concatenate %76, %77, %78, %79, %80, %81, %82, %83 in 1 : vector<1x8xf32>, vector<1x8xf32>, vector<1x8xf32>, vector<1x8xf32>, vector<1x8xf32>, vector<1x8xf32>, vector<1x8xf32>, vector<1x8xf32> -> vector<1x64xf32>
    %c1 = arith.constant 1 : index
    %c0_18 = arith.constant 0 : index
    %c0_19 = arith.constant 0 : index
    %85 = vector.load %arg4[%c1, %c0_18, %c0_19] : memref<2x1x64xf32, #tpu.memory_space<vmem>>, vector<1x1x64xf32>
    %86 = vector.shape_cast %85 : vector<1x1x64xf32> to vector<1x64xf32>
    %87 = vector.shape_cast %84 : vector<1x64xf32> to vector<1x1x64xf32>
    tpu.vector_store %arg4[%c1, %c0_18, %c0_19], %87 {strides = array<i32>} : memref<2x1x64xf32, #tpu.memory_space<vmem>>, vector<1x1x64xf32>,
    %88 = vector.extract_strided_slice %73 {offsets = [0, 128], sizes = [8, 128], strides = [1, 1]} : vector<8x640xf32> to vector<8x128xf32>
    %cst_20 = arith.constant dense<0.000000e+00> : vector<8x8xf32>
    %89 = tpu.matmul %72, %88, %cst_20 {dimension_numbers = #tpu.dot_dimension_numbers<[1], [1], [0], [0], [0, 0, 1, 0], [], []>} : vector<8x128xf32>, vector<8x128xf32>, vector<8x8xf32> -> vector<8x8xf32>
    %90 = vector.extract_strided_slice %89 {offsets = [0, 0], sizes = [1, 8], strides = [1, 1]} : vector<8x8xf32> to vector<1x8xf32>
    %91 = vector.extract_strided_slice %89 {offsets = [1, 0], sizes = [1, 8], strides = [1, 1]} : vector<8x8xf32> to vector<1x8xf32>
    %92 = vector.extract_strided_slice %89 {offsets = [2, 0], sizes = [1, 8], strides = [1, 1]} : vector<8x8xf32> to vector<1x8xf32>
    %93 = vector.extract_strided_slice %89 {offsets = [3, 0], sizes = [1, 8], strides = [1, 1]} : vector<8x8xf32> to vector<1x8xf32>
    %94 = vector.extract_strided_slice %89 {offsets = [4, 0], sizes = [1, 8], strides = [1, 1]} : vector<8x8xf32> to vector<1x8xf32>
    %95 = vector.extract_strided_slice %89 {offsets = [5, 0], sizes = [1, 8], strides = [1, 1]} : vector<8x8xf32> to vector<1x8xf32>
    %96 = vector.extract_strided_slice %89 {offsets = [6, 0], sizes = [1, 8], strides = [1, 1]} : vector<8x8xf32> to vector<1x8xf32>
    %97 = vector.extract_strided_slice %89 {offsets = [7, 0], sizes = [1, 8], strides = [1, 1]} : vector<8x8xf32> to vector<1x8xf32>
    %98 = tpu.concatenate %90, %91, %92, %93, %94, %95, %96, %97 in 1 : vector<1x8xf32>, vector<1x8xf32>, vector<1x8xf32>, vector<1x8xf32>, vector<1x8xf32>, vector<1x8xf32>, vector<1x8xf32>, vector<1x8xf32> -> vector<1x64xf32>
    %99 = vector.extract_strided_slice %73 {offsets = [0, 256], sizes = [8, 128], strides = [1, 1]} : vector<8x640xf32> to vector<8x128xf32>
    %cst_21 = arith.constant dense<0.000000e+00> : vector<8x8xf32>
    %100 = tpu.matmul %72, %99, %cst_21 {dimension_numbers = #tpu.dot_dimension_numbers<[1], [1], [0], [0], [0, 0, 1, 0], [], []>} : vector<8x128xf32>, vector<8x128xf32>, vector<8x8xf32> -> vector<8x8xf32>
    %101 = vector.extract_strided_slice %100 {offsets = [0, 0], sizes = [1, 8], strides = [1, 1]} : vector<8x8xf32> to vector<1x8xf32>
    %102 = vector.extract_strided_slice %100 {offsets = [1, 0], sizes = [1, 8], strides = [1, 1]} : vector<8x8xf32> to vector<1x8xf32>
    %103 = vector.extract_strided_slice %100 {offsets = [2, 0], sizes = [1, 8], strides = [1, 1]} : vector<8x8xf32> to vector<1x8xf32>
    %104 = vector.extract_strided_slice %100 {offsets = [3, 0], sizes = [1, 8], strides = [1, 1]} : vector<8x8xf32> to vector<1x8xf32>
    %105 = vector.extract_strided_slice %100 {offsets = [4, 0], sizes = [1, 8], strides = [1, 1]} : vector<8x8xf32> to vector<1x8xf32>
    %106 = vector.extract_strided_slice %100 {offsets = [5, 0], sizes = [1, 8], strides = [1, 1]} : vector<8x8xf32> to vector<1x8xf32>
    %107 = vector.extract_strided_slice %100 {offsets = [6, 0], sizes = [1, 8], strides = [1, 1]} : vector<8x8xf32> to vector<1x8xf32>
    %108 = vector.extract_strided_slice %100 {offsets = [7, 0], sizes = [1, 8], strides = [1, 1]} : vector<8x8xf32> to vector<1x8xf32>
    %109 = tpu.concatenate %101, %102, %103, %104, %105, %106, %107, %108 in 1 : vector<1x8xf32>, vector<1x8xf32>, vector<1x8xf32>, vector<1x8xf32>, vector<1x8xf32>, vector<1x8xf32>, vector<1x8xf32>, vector<1x8xf32> -> vector<1x64xf32>
    %110 = vector.extract_strided_slice %73 {offsets = [0, 384], sizes = [8, 128], strides = [1, 1]} : vector<8x640xf32> to vector<8x128xf32>
    %cst_22 = arith.constant dense<0.000000e+00> : vector<8x8xf32>
    %111 = tpu.matmul %72, %110, %cst_22 {dimension_numbers = #tpu.dot_dimension_numbers<[1], [1], [0], [0], [0, 0, 1, 0], [], []>} : vector<8x128xf32>, vector<8x128xf32>, vector<8x8xf32> -> vector<8x8xf32>
    %112 = vector.extract_strided_slice %111 {offsets = [0, 0], sizes = [1, 8], strides = [1, 1]} : vector<8x8xf32> to vector<1x8xf32>
    %113 = vector.extract_strided_slice %111 {offsets = [1, 0], sizes = [1, 8], strides = [1, 1]} : vector<8x8xf32> to vector<1x8xf32>
    %114 = vector.extract_strided_slice %111 {offsets = [2, 0], sizes = [1, 8], strides = [1, 1]} : vector<8x8xf32> to vector<1x8xf32>
    %115 = vector.extract_strided_slice %111 {offsets = [3, 0], sizes = [1, 8], strides = [1, 1]} : vector<8x8xf32> to vector<1x8xf32>
    %116 = vector.extract_strided_slice %111 {offsets = [4, 0], sizes = [1, 8], strides = [1, 1]} : vector<8x8xf32> to vector<1x8xf32>
    %117 = vector.extract_strided_slice %111 {offsets = [5, 0], sizes = [1, 8], strides = [1, 1]} : vector<8x8xf32> to vector<1x8xf32>
    %118 = vector.extract_strided_slice %111 {offsets = [6, 0], sizes = [1, 8], strides = [1, 1]} : vector<8x8xf32> to vector<1x8xf32>
    %119 = vector.extract_strided_slice %111 {offsets = [7, 0], sizes = [1, 8], strides = [1, 1]} : vector<8x8xf32> to vector<1x8xf32>
    %120 = tpu.concatenate %112, %113, %114, %115, %116, %117, %118, %119 in 1 : vector<1x8xf32>, vector<1x8xf32>, vector<1x8xf32>, vector<1x8xf32>, vector<1x8xf32>, vector<1x8xf32>, vector<1x8xf32>, vector<1x8xf32> -> vector<1x64xf32>
    %121 = vector.extract_strided_slice %73 {offsets = [0, 512], sizes = [8, 128], strides = [1, 1]} : vector<8x640xf32> to vector<8x128xf32>
    %cst_23 = arith.constant dense<0.000000e+00> : vector<8x8xf32>
    %122 = tpu.matmul %72, %121, %cst_23 {dimension_numbers = #tpu.dot_dimension_numbers<[1], [1], [0], [0], [0, 0, 1, 0], [], []>} : vector<8x128xf32>, vector<8x128xf32>, vector<8x8xf32> -> vector<8x8xf32>
    %123 = vector.extract_strided_slice %122 {offsets = [0, 0], sizes = [1, 8], strides = [1, 1]} : vector<8x8xf32> to vector<1x8xf32>
    %124 = vector.extract_strided_slice %122 {offsets = [1, 0], sizes = [1, 8], strides = [1, 1]} : vector<8x8xf32> to vector<1x8xf32>
    %125 = vector.extract_strided_slice %122 {offsets = [2, 0], sizes = [1, 8], strides = [1, 1]} : vector<8x8xf32> to vector<1x8xf32>
    %126 = vector.extract_strided_slice %122 {offsets = [3, 0], sizes = [1, 8], strides = [1, 1]} : vector<8x8xf32> to vector<1x8xf32>
    %127 = vector.extract_strided_slice %122 {offsets = [4, 0], sizes = [1, 8], strides = [1, 1]} : vector<8x8xf32> to vector<1x8xf32>
    %128 = vector.extract_strided_slice %122 {offsets = [5, 0], sizes = [1, 8], strides = [1, 1]} : vector<8x8xf32> to vector<1x8xf32>
    %129 = vector.extract_strided_slice %122 {offsets = [6, 0], sizes = [1, 8], strides = [1, 1]} : vector<8x8xf32> to vector<1x8xf32>
    %130 = vector.extract_strided_slice %122 {offsets = [7, 0], sizes = [1, 8], strides = [1, 1]} : vector<8x8xf32> to vector<1x8xf32>
    %131 = tpu.concatenate %123, %124, %125, %126, %127, %128, %129, %130 in 1 : vector<1x8xf32>, vector<1x8xf32>, vector<1x8xf32>, vector<1x8xf32>, vector<1x8xf32>, vector<1x8xf32>, vector<1x8xf32>, vector<1x8xf32> -> vector<1x64xf32>
    %132 = tpu.concatenate %98, %109, %120, %131 in 1 : vector<1x64xf32>, vector<1x64xf32>, vector<1x64xf32>, vector<1x64xf32> -> vector<1x256xf32>
    %c1_24 = arith.constant 1 : index
    %c0_25 = arith.constant 0 : index
    %c0_26 = arith.constant 0 : index
    %133 = vector.load %arg5[%c1_24, %c0_25, %c0_26] : memref<2x1x256xf32, #tpu.memory_space<vmem>>, vector<1x1x256xf32>
    %134 = vector.shape_cast %133 : vector<1x1x256xf32> to vector<1x256xf32>
    %135 = vector.shape_cast %132 : vector<1x256xf32> to vector<1x1x256xf32>
    tpu.vector_store %arg5[%c1_24, %c0_25, %c0_26], %135 {strides = array<i32>} : memref<2x1x256xf32, #tpu.memory_space<vmem>>, vector<1x1x256xf32>,
    return
  }
  func.func @transform_0(%arg0: i32) -> (i32, i32) {
    %c0_i32 = arith.constant 0 : i32
    %c0_i32_0 = arith.constant 0 : i32
    return %arg0, %c0_i32 : i32, i32
  }
  func.func @transform_1(%arg0: i32) -> (i32, i32) {
    %c0_i32 = arith.constant 0 : i32
    %c0_i32_0 = arith.constant 0 : i32
    %c0_i32_1 = arith.constant 0 : i32
    return %c0_i32, %c0_i32_0 : i32, i32
  }
  func.func @transform_2(%arg0: i32) -> (i32, i32) {
    %c0_i32 = arith.constant 0 : i32
    %c0_i32_0 = arith.constant 0 : i32
    %c0_i32_1 = arith.constant 0 : i32
    return %c0_i32, %c0_i32_0 : i32, i32
  }
  func.func @transform_3(%arg0: i32) -> (i32, i32, i32) {
    %c0_i32 = arith.constant 0 : i32
    %c0_i32_0 = arith.constant 0 : i32
    %c0_i32_1 = arith.constant 0 : i32
    return %arg0, %c0_i32, %c0_i32_0 : i32, i32, i32
  }
  func.func @transform_4(%arg0: i32) -> (i32, i32, i32) {
    %c0_i32 = arith.constant 0 : i32
    %c0_i32_0 = arith.constant 0 : i32
    %c0_i32_1 = arith.constant 0 : i32
    return %arg0, %c0_i32, %c0_i32_0 : i32, i32, i32
  }
}

</mosaic_0001>

<llo_original>
// kernel: scorer_forward.1
$region0: #{scorer_forward.1}
  #allocation0 [shape = 'u32[]', space=smem, size = 0x4, offset = 0x4, fixed_abs, tag = 'smem constant byte address 0x4 - core index']
  #allocation1 [shape = 'u32[144,128]{1,0:T(1,128)}', space=vmem, size = 0x12000, scoped, tag = 'internal scratch']
  %s0 = inlined_call_operand.hbm [shape: f32[16,128], index: 0, kind: input, shape index: {}]
  %s1 = inlined_call_operand.hbm [shape: f32[128,512], index: 1, kind: input, shape index: {}]
  %s2 = inlined_call_operand.hbm [shape: f32[640,256], index: 2, kind: input, shape index: {}]
  %s3 = inlined_call_operand.vmem [shape: f32[2,1,64], index: 3, kind: output, shape index: {0}]
  %s4 = inlined_call_operand.vmem [shape: f32[2,1,256], index: 4, kind: output, shape index: {1}]
  %5 = xla_tuple %s3, %s4
  %s6 = sld [smem:[#allocation0]]
  $region42: #{scorer_forward.1} parent=0
    _
  %s8 = ssub.s32 1, %s6
  %s9 = scalar_select 0, %s8, %s6
  $region1: #{scorer_forward.1} parent=0
    #allocation2 [shape = 'u8[8192]{0}', space=vmem, size = 0x2000, scoped, tag = 'input window, operand 0, single buffered']
    #allocation3 [shape = 's32[1]{0}', space=sflag, size = 0x4, scoped, tag = 'scoped memory for scorer_forward.1']
    #allocation4 [shape = 'u8[262144]{0}', space=vmem, size = 0x40000, scoped, tag = 'input window, operand 1, single buffered']
    #allocation5 [shape = 's32[1]{0}', space=sflag, size = 0x4, scoped, tag = 'scoped memory for scorer_forward.1']
    #allocation6 [shape = 'u8[655360]{0}', space=vmem, size = 0xa0000, scoped, tag = 'input window, operand 2, single buffered']
    %10 = vsyncpa [#allocation3], 0
    %11 = vsyncpa [#allocation5], 0
    // Predicated region
    $region2: #{scorer_forward.1} parent=1 // pred_check
      _
    $region3: #{scorer_forward.1} parent=1 // pred_check_branch
      %13 = sbr.rel (0) target = $region5
    $region4: #{scorer_forward.1} parent=1 // pred_region
      %s15 = ssub.s32 256, 256
      %16 = vsyncadd [#allocation3], %s15
      %s17 = sshll.u32 [#allocation2], 4
      %s18 = int_to_ptr.vmem [resolvable:$true] %s17
      %23 = dma.hbm_to_vmem [thread:$0]  %s0, 256, %s18, [#allocation3], 128, 128, 8
    $region5: #{scorer_forward.1} parent=1 // pred_fallthru
      _
    // Predicated region
    $region6: #{scorer_forward.1} parent=1 // pred_check
      _
    $region7: #{scorer_forward.1} parent=1 // pred_check_branch
      %25 = sbr.rel (0) target = $region9
    $region8: #{scorer_forward.1} parent=1 // pred_region
      %s27 = ssub.s32 8192, 8192
      %28 = vsyncadd [#allocation5], %s27
      %s29 = sshll.u32 [#allocation4], 4
      %s30 = int_to_ptr.vmem [resolvable:$true] %s29
      %35 = dma.hbm_to_vmem [thread:$0]  %s1, 8192, %s30, [#allocation5], 512, 512, 32
    $region9: #{scorer_forward.1} parent=1 // pred_fallthru
      _
    // Predicated region
    $region10: #{scorer_forward.1} parent=1 // pred_check
      _
    $region11: #{scorer_forward.1} parent=1 // pred_check_branch
      %37 = sbr.rel (0) target = $region13
    $region12: #{scorer_forward.1} parent=1 // pred_region
      %s39 = ssub.s32 20480, 20480
      %40 = vsyncadd [#allocation5], %s39
      %s41 = sshll.u32 [#allocation6], 4
      %s42 = int_to_ptr.vmem [resolvable:$true] %s41
      %47 = dma.hbm_to_vmem [thread:$0]  %s2, 20480, %s42, [#allocation5], 256, 256, 16
    $region13: #{scorer_forward.1} parent=1 // pred_fallthru
      _
    // Predicated region
    $region14: #{scorer_forward.1} parent=1 // pred_check
      _
    $region15: #{scorer_forward.1} parent=1 // pred_check_branch
      %49 = sbr.rel (0) target = $region17
    $region16: #{scorer_forward.1} parent=1 // pred_region
      %50 = dma.done [#allocation3], 256
    $region17: #{scorer_forward.1} parent=1 // pred_fallthru
      _
    // Predicated region
    $region18: #{scorer_forward.1} parent=1 // pred_check
      _
    $region19: #{scorer_forward.1} parent=1 // pred_check_branch
      %52 = sbr.rel (0) target = $region21
    $region20: #{scorer_forward.1} parent=1 // pred_region
      %53 = dma.done [#allocation5], 8192
    $region21: #{scorer_forward.1} parent=1 // pred_fallthru
      _
    // Predicated region
    $region22: #{scorer_forward.1} parent=1 // pred_check
      _
    $region23: #{scorer_forward.1} parent=1 // pred_check_branch
      %55 = sbr.rel (0) target = $region25
    $region24: #{scorer_forward.1} parent=1 // pred_region
      %56 = dma.done [#allocation5], 20480
    $region25: #{scorer_forward.1} parent=1 // pred_fallthru
      _
    %v57 = vld [vmem:[#allocation2] sm:$0xff]
    %v58 = vld [vmem:[#allocation2 + $0x8] sm:$0xff]
    %v59 = vld [vmem:[#allocation4] sm:$0xff]
    %v60 = vld [vmem:[#allocation4 + $0x8] sm:$0xff]
    %v61 = vld [vmem:[#allocation4 + $0x10] sm:$0xff]
    %v62 = vld [vmem:[#allocation4 + $0x18] sm:$0xff]
    %v63 = vld [vmem:[#allocation4 + $0x20] sm:$0xff]
    %v64 = vld [vmem:[#allocation4 + $0x28] sm:$0xff]
    %v65 = vld [vmem:[#allocation4 + $0x30] sm:$0xff]
    %v66 = vld [vmem:[#allocation4 + $0x38] sm:$0xff]
    %v67 = vld [vmem:[#allocation4 + $0x40] sm:$0xff]
    %v68 = vld [vmem:[#allocation4 + $0x48] sm:$0xff]
    %v69 = vld [vmem:[#allocation4 + $0x50] sm:$0xff]
    %v70 = vld [vmem:[#allocation4 + $0x58] sm:$0xff]
    %v71 = vld [vmem:[#allocation4 + $0x60] sm:$0xff]
    %v72 = vld [vmem:[#allocation4 + $0x68] sm:$0xff]
    %v73 = vld [vmem:[#allocation4 + $0x70] sm:$0xff]
    %v74 = vld [vmem:[#allocation4 + $0x78] sm:$0xff]
    %v75 = vld [vmem:[#allocation4 + $0x80] sm:$0xff]
    %v76 = vld [vmem:[#allocation4 + $0x88] sm:$0xff]
    %v77 = vld [vmem:[#allocation4 + $0x90] sm:$0xff]
    %v78 = vld [vmem:[#allocation4 + $0x98] sm:$0xff]
    %v79 = vld [vmem:[#allocation4 + $0xa0] sm:$0xff]
    %v80 = vld [vmem:[#allocation4 + $0xa8] sm:$0xff]
    %v81 = vld [vmem:[#allocation4 + $0xb0] sm:$0xff]
    %v82 = vld [vmem:[#allocation4 + $0xb8] sm:$0xff]
    %v83 = vld [vmem:[#allocation4 + $0xc0] sm:$0xff]
    %v84 = vld [vmem:[#allocation4 + $0xc8] sm:$0xff]
    %v85 = vld [vmem:[#allocation4 + $0xd0] sm:$0xff]
    %v86 = vld [vmem:[#allocation4 + $0xd8] sm:$0xff]
    %v87 = vld [vmem:[#allocation4 + $0xe0] sm:$0xff]
    %v88 = vld [vmem:[#allocation4 + $0xe8] sm:$0xff]
    %v89 = vld [vmem:[#allocation4 + $0xf0] sm:$0xff]
    %v90 = vld [vmem:[#allocation4 + $0xf8] sm:$0xff]
    %v91 = vld [vmem:[#allocation4 + $0x100] sm:$0xff]
    %v92 = vld [vmem:[#allocation4 + $0x108] sm:$0xff]
    %v93 = vld [vmem:[#allocation4 + $0x110] sm:$0xff]
    %v94 = vld [vmem:[#allocation4 + $0x118] sm:$0xff]
    %v95 = vld [vmem:[#allocation4 + $0x120] sm:$0xff]
    %v96 = vld [vmem:[#allocation4 + $0x128] sm:$0xff]
    %v97 = vld [vmem:[#allocation4 + $0x130] sm:$0xff]
    %v98 = vld [vmem:[#allocation4 + $0x138] sm:$0xff]
    %v99 = vld [vmem:[#allocation4 + $0x140] sm:$0xff]
    %v100 = vld [vmem:[#allocation4 + $0x148] sm:$0xff]
    %v101 = vld [vmem:[#allocation4 + $0x150] sm:$0xff]
    %v102 = vld [vmem:[#allocation4 + $0x158] sm:$0xff]
    %v103 = vld [vmem:[#allocation4 + $0x160] sm:$0xff]
    %v104 = vld [vmem:[#allocation4 + $0x168] sm:$0xff]
    %v105 = vld [vmem:[#allocation4 + $0x170] sm:$0xff]
    %v106 = vld [vmem:[#allocation4 + $0x178] sm:$0xff]
    %v107 = vld [vmem:[#allocation4 + $0x180] sm:$0xff]
    %v108 = vld [vmem:[#allocation4 + $0x188] sm:$0xff]
    %v109 = vld [vmem:[#allocation4 + $0x190] sm:$0xff]
    %v110 = vld [vmem:[#allocation4 + $0x198] sm:$0xff]
    %v111 = vld [vmem:[#allocation4 + $0x1a0] sm:$0xff]
    %v112 = vld [vmem:[#allocation4 + $0x1a8] sm:$0xff]
    %v113 = vld [vmem:[#allocation4 + $0x1b0] sm:$0xff]
    %v114 = vld [vmem:[#allocation4 + $0x1b8] sm:$0xff]
    %v115 = vld [vmem:[#allocation4 + $0x1c0] sm:$0xff]
    %v116 = vld [vmem:[#allocation4 + $0x1c8] sm:$0xff]
    %v117 = vld [vmem:[#allocation4 + $0x1d0] sm:$0xff]
    %v118 = vld [vmem:[#allocation4 + $0x1d8] sm:$0xff]
    %v119 = vld [vmem:[#allocation4 + $0x1e0] sm:$0xff]
    %v120 = vld [vmem:[#allocation4 + $0x1e8] sm:$0xff]
    %v121 = vld [vmem:[#allocation4 + $0x1f0] sm:$0xff]
    %v122 = vld [vmem:[#allocation4 + $0x1f8] sm:$0xff]
    %123 = vmatprep.subr.mxu0 %v60
    %124 = vmatpush1.msra.mxu0 %v59
    %125 = vmatprep.subr.mxu0 %v64
    %126 = vmatpush1.msra.mxu0 %v63
    %127 = vmatprep.subr.mxu0 %v68
    %128 = vmatpush1.msra.mxu0 %v67
    %129 = vmatprep.subr.mxu0 %v72
    %130 = vmatpush1.msra.mxu0 %v71
    %131 = vmatprep.subr.mxu0 %v76
    %132 = vmatpush1.msra.mxu0 %v75
    %133 = vmatprep.subr.mxu0 %v80
    %134 = vmatpush1.msra.mxu0 %v79
    %135 = vmatprep.subr.mxu0 %v84
    %136 = vmatpush1.msra.mxu0 %v83
    %137 = vmatprep.subr.mxu0 %v88
    %138 = vmatpush1.msra.mxu0 %v87
    %139 = vmatprep.subr.mxu0 %v92
    %140 = vmatpush1.msra.mxu0 %v91
    %141 = vmatprep.subr.mxu0 %v96
    %142 = vmatpush1.msra.mxu0 %v95
    %143 = vmatprep.subr.mxu0 %v100
    %144 = vmatpush1.msra.mxu0 %v99
    %145 = vmatprep.subr.mxu0 %v104
    %146 = vmatpush1.msra.mxu0 %v103
    %147 = vmatprep.subr.mxu0 %v108
    %148 = vmatpush1.msra.mxu0 %v107
    %149 = vmatprep.subr.mxu0 %v112
    %150 = vmatpush1.msra.mxu0 %v111
    %151 = vmatprep.subr.mxu0 %v116
    %152 = vmatpush1.msra.mxu0 %v115
    %153 = vmatprep.subr.mxu0 %v120
    %154 = vmatpush1.msra.mxu0 %v119
    %155 = vmatprep.subr.mxu0 0.0
    %156 = vmatpush1.msra.mxu0 0.0
    %157 = vmatprep.subr.mxu0 0.0
    %158 = vmatpush1.msra.mxu0 0.0
    %159 = vmatprep.subr.mxu0 0.0
    %160 = vmatpush1.msra.mxu0 0.0
    %161 = vmatprep.subr.mxu0 0.0
    %162 = vmatpush1.msra.mxu0 0.0
    %163 = vmatprep.subr.mxu0 0.0
    %164 = vmatpush1.msra.mxu0 0.0
    %165 = vmatprep.subr.mxu0 0.0
    %166 = vmatpush1.msra.mxu0 0.0
    %167 = vmatprep.subr.mxu0 0.0
    %168 = vmatpush1.msra.mxu0 0.0
    %169 = vmatprep.subr.mxu0 0.0
    %170 = vmatpush1.msra.mxu0 0.0
    %171 = vmatprep.subr.mxu0 0.0
    %172 = vmatpush1.msra.mxu0 0.0
    %173 = vmatprep.subr.mxu0 0.0
    %174 = vmatpush1.msra.mxu0 0.0
    %175 = vmatprep.subr.mxu0 0.0
    %176 = vmatpush1.msra.mxu0 0.0
    %177 = vmatprep.subr.mxu0 0.0
    %178 = vmatpush1.msra.mxu0 0.0
    %179 = vmatprep.subr.mxu0 0.0
    %180 = vmatpush1.msra.mxu0 0.0
    %181 = vmatprep.subr.mxu0 0.0
    %182 = vmatpush1.msra.mxu0 0.0
    %183 = vmatprep.subr.mxu0 0.0
    %184 = vmatpush1.msra.mxu0 0.0
    %185 = vmatprep.subr.mxu0 0.0
    %186 = vmatpush1.msra.mxu0 0.0
    %187 = vmatprep.mubr.f32.mxu0 0.0
    %188 = vmatmul.mubr.f32.gmra.mrb[0].mxu0 %v57
    %v189 = vpop.f32.mrb[0].mxu0
    %v190 = vadd.f32 0.0, %v189
    %v191 = vpop.f32.mrb[0].mxu0
    %v192 = vadd.f32 0.0, %v191
    %193 = vmatprep.mubr.f32.mxu0 0.0
    %194 = vmatmul.mubr.f32.gmra.mrb[0].mxu0 %v58
    %v195 = vpop.f32.mrb[0].mxu0
    %v196 = vadd.f32 0.0, %v195
    %v197 = vpop.f32.mrb[0].mxu0
    %v198 = vadd.f32 0.0, %v197
    %199 = vdwg.mxu0
    %200 = vmatprep.subr.mxu0 %v62
    %201 = vmatpush1.msra.mxu0 %v61
    %202 = vmatprep.subr.mxu0 %v66
    %203 = vmatpush1.msra.mxu0 %v65
    %204 = vmatprep.subr.mxu0 %v70
    %205 = vmatpush1.msra.mxu0 %v69
    %206 = vmatprep.subr.mxu0 %v74
    %207 = vmatpush1.msra.mxu0 %v73
    %208 = vmatprep.subr.mxu0 %v78
    %209 = vmatpush1.msra.mxu0 %v77
    %210 = vmatprep.subr.mxu0 %v82
    %211 = vmatpush1.msra.mxu0 %v81
    %212 = vmatprep.subr.mxu0 %v86
    %213 = vmatpush1.msra.mxu0 %v85
    %214 = vmatprep.subr.mxu0 %v90
    %215 = vmatpush1.msra.mxu0 %v89
    %216 = vmatprep.subr.mxu0 %v94
    %217 = vmatpush1.msra.mxu0 %v93
    %218 = vmatprep.subr.mxu0 %v98
    %219 = vmatpush1.msra.mxu0 %v97
    %220 = vmatprep.subr.mxu0 %v102
    %221 = vmatpush1.msra.mxu0 %v101
    %222 = vmatprep.subr.mxu0 %v106
    %223 = vmatpush1.msra.mxu0 %v105
    %224 = vmatprep.subr.mxu0 %v110
    %225 = vmatpush1.msra.mxu0 %v109
    %226 = vmatprep.subr.mxu0 %v114
    %227 = vmatpush1.msra.mxu0 %v113
    %228 = vmatprep.subr.mxu0 %v118
    %229 = vmatpush1.msra.mxu0 %v117
    %230 = vmatprep.subr.mxu0 %v122
    %231 = vmatpush1.msra.mxu0 %v121
    %232 = vmatprep.subr.mxu0 0.0
    %233 = vmatpush1.msra.mxu0 0.0
    %234 = vmatprep.subr.mxu0 0.0
    %235 = vmatpush1.msra.mxu0 0.0
    %236 = vmatprep.subr.mxu0 0.0
    %237 = vmatpush1.msra.mxu0 0.0
    %238 = vmatprep.subr.mxu0 0.0
    %239 = vmatpush1.msra.mxu0 0.0
    %240 = vmatprep.subr.mxu0 0.0
    %241 = vmatpush1.msra.mxu0 0.0
    %242 = vmatprep.subr.mxu0 0.0
    %243 = vmatpush1.msra.mxu0 0.0
    %244 = vmatprep.subr.mxu0 0.0
    %245 = vmatpush1.msra.mxu0 0.0
    %246 = vmatprep.subr.mxu0 0.0
    %247 = vmatpush1.msra.mxu0 0.0
    %248 = vmatprep.subr.mxu0 0.0
    %249 = vmatpush1.msra.mxu0 0.0
    %250 = vmatprep.subr.mxu0 0.0
    %251 = vmatpush1.msra.mxu0 0.0
    %252 = vmatprep.subr.mxu0 0.0
    %253 = vmatpush1.msra.mxu0 0.0
    %254 = vmatprep.subr.mxu0 0.0
    %255 = vmatpush1.msra.mxu0 0.0
    %256 = vmatprep.subr.mxu0 0.0
    %257 = vmatpush1.msra.mxu0 0.0
    %258 = vmatprep.subr.mxu0 0.0
    %259 = vmatpush1.msra.mxu0 0.0
    %260 = vmatprep.subr.mxu0 0.0
    %261 = vmatpush1.msra.mxu0 0.0
    %262 = vmatprep.subr.mxu0 0.0
    %263 = vmatpush1.msra.mxu0 0.0
    %264 = vmatprep.mubr.f32.mxu0 0.0
    %265 = vmatmul.mubr.f32.gmra.mrb[0].mxu0 %v57
    %v266 = vpop.f32.mrb[0].mxu0
    %v267 = vadd.f32 0.0, %v266
    %v268 = vpop.f32.mrb[0].mxu0
    %v269 = vadd.f32 0.0, %v268
    %270 = vmatprep.mubr.f32.mxu0 0.0
    %271 = vmatmul.mubr.f32.gmra.mrb[0].mxu0 %v58
    %v272 = vpop.f32.mrb[0].mxu0
    %v273 = vadd.f32 0.0, %v272
    %v274 = vpop.f32.mrb[0].mxu0
    %v275 = vadd.f32 0.0, %v274
    %276 = vdwg.mxu0
    %v277 = vld [vmem:[#allocation6] sm:$0xff]
    %v278 = vld [vmem:[#allocation6 + $0x8] sm:$0xff]
    %v279 = vld [vmem:[#allocation6 + $0x10] sm:$0xff]
    %v280 = vld [vmem:[#allocation6 + $0x18] sm:$0xff]
    %v281 = vld [vmem:[#allocation6 + $0x20] sm:$0xff]
    %v282 = vld [vmem:[#allocation6 + $0x28] sm:$0xff]
    %v283 = vld [vmem:[#allocation6 + $0x30] sm:$0xff]
    %v284 = vld [vmem:[#allocation6 + $0x38] sm:$0xff]
    %v285 = vld [vmem:[#allocation6 + $0x40] sm:$0xff]
    %v286 = vld [vmem:[#allocation6 + $0x48] sm:$0xff]
    %v287 = vld [vmem:[#allocation6 + $0x50] sm:$0xff]
    %v288 = vld [vmem:[#allocation6 + $0x58] sm:$0xff]
    %v289 = vld [vmem:[#allocation6 + $0x60] sm:$0xff]
    %v290 = vld [vmem:[#allocation6 + $0x68] sm:$0xff]
    %v291 = vld [vmem:[#allocation6 + $0x70] sm:$0xff]
    %v292 = vld [vmem:[#allocation6 + $0x78] sm:$0xff]
    %v293 = vld [vmem:[#allocation6 + $0x80] sm:$0xff]
    %v294 = vld [vmem:[#allocation6 + $0x88] sm:$0xff]
    %v295 = vld [vmem:[#allocation6 + $0x90] sm:$0xff]
    %v296 = vld [vmem:[#allocation6 + $0x98] sm:$0xff]
    %v297 = vld [vmem:[#allocation6 + $0xa0] sm:$0xff]
    %v298 = vld [vmem:[#allocation6 + $0xa8] sm:$0xff]
    %v299 = vld [vmem:[#allocation6 + $0xb0] sm:$0xff]
    %v300 = vld [vmem:[#allocation6 + $0xb8] sm:$0xff]
    %v301 = vld [vmem:[#allocation6 + $0xc0] sm:$0xff]
    %v302 = vld [vmem:[#allocation6 + $0xc8] sm:$0xff]
    %v303 = vld [vmem:[#allocation6 + $0xd0] sm:$0xff]
    %v304 = vld [vmem:[#allocation6 + $0xd8] sm:$0xff]
    %v305 = vld [vmem:[#allocation6 + $0xe0] sm:$0xff]
    %v306 = vld [vmem:[#allocation6 + $0xe8] sm:$0xff]
    %v307 = vld [vmem:[#allocation6 + $0xf0] sm:$0xff]
    %v308 = vld [vmem:[#allocation6 + $0xf8] sm:$0xff]
    %v309 = vld [vmem:[#allocation6 + $0x100] sm:$0xff]
    %v310 = vld [vmem:[#allocation6 + $0x108] sm:$0xff]
    %v311 = vld [vmem:[#allocation6 + $0x110] sm:$0xff]
    %v312 = vld [vmem:[#allocation6 + $0x118] sm:$0xff]
    %v313 = vld [vmem:[#allocation6 + $0x120] sm:$0xff]
    %v314 = vld [vmem:[#allocation6 + $0x128] sm:$0xff]
    %v315 = vld [vmem:[#allocation6 + $0x130] sm:$0xff]
    %v316 = vld [vmem:[#allocation6 + $0x138] sm:$0xff]
    %v317 = vld [vmem:[#allocation6 + $0x140] sm:$0xff]
    %v318 = vld [vmem:[#allocation6 + $0x148] sm:$0xff]
    %v319 = vld [vmem:[#allocation6 + $0x150] sm:$0xff]
    %v320 = vld [vmem:[#allocation6 + $0x158] sm:$0xff]
    %v321 = vld [vmem:[#allocation6 + $0x160] sm:$0xff]
    %v322 = vld [vmem:[#allocation6 + $0x168] sm:$0xff]
    %v323 = vld [vmem:[#allocation6 + $0x170] sm:$0xff]
    %v324 = vld [vmem:[#allocation6 + $0x178] sm:$0xff]
    %v325 = vld [vmem:[#allocation6 + $0x180] sm:$0xff]
    %v326 = vld [vmem:[#allocation6 + $0x188] sm:$0xff]
    %v327 = vld [vmem:[#allocation6 + $0x190] sm:$0xff]
    %v328 = vld [vmem:[#allocation6 + $0x198] sm:$0xff]
    %v329 = vld [vmem:[#allocation6 + $0x1a0] sm:$0xff]
    %v330 = vld [vmem:[#allocation6 + $0x1a8] sm:$0xff]
    %v331 = vld [vmem:[#allocation6 + $0x1b0] sm:$0xff]
    %v332 = vld [vmem:[#allocation6 + $0x1b8] sm:$0xff]
    %v333 = vld [vmem:[#allocation6 + $0x1c0] sm:$0xff]
    %v334 = vld [vmem:[#allocation6 + $0x1c8] sm:$0xff]
    %v335 = vld [vmem:[#allocation6 + $0x1d0] sm:$0xff]
    %v336 = vld [vmem:[#allocation6 + $0x1d8] sm:$0xff]
    %v337 = vld [vmem:[#allocation6 + $0x1e0] sm:$0xff]
    %v338 = vld [vmem:[#allocation6 + $0x1e8] sm:$0xff]
    %v339 = vld [vmem:[#allocation6 + $0x1f0] sm:$0xff]
    %v340 = vld [vmem:[#allocation6 + $0x1f8] sm:$0xff]
    %v341 = vld [vmem:[#allocation6 + $0x200] sm:$0xff]
    %v342 = vld [vmem:[#allocation6 + $0x208] sm:$0xff]
    %v343 = vld [vmem:[#allocation6 + $0x210] sm:$0xff]
    %v344 = vld [vmem:[#allocation6 + $0x218] sm:$0xff]
    %v345 = vld [vmem:[#allocation6 + $0x220] sm:$0xff]
    %v346 = vld [vmem:[#allocation6 + $0x228] sm:$0xff]
    %v347 = vld [vmem:[#allocation6 + $0x230] sm:$0xff]
    %v348 = vld [vmem:[#allocation6 + $0x238] sm:$0xff]
    %v349 = vld [vmem:[#allocation6 + $0x240] sm:$0xff]
    %v350 = vld [vmem:[#allocation6 + $0x248] sm:$0xff]
    %v351 = vld [vmem:[#allocation6 + $0x250] sm:$0xff]
    %v352 = vld [vmem:[#allocation6 + $0x258] sm:$0xff]
    %v353 = vld [vmem:[#allocation6 + $0x260] sm:$0xff]
    %v354 = vld [vmem:[#allocation6 + $0x268] sm:$0xff]
    %v355 = vld [vmem:[#allocation6 + $0x270] sm:$0xff]
    %v356 = vld [vmem:[#allocation6 + $0x278] sm:$0xff]
    %v357 = vld [vmem:[#allocation6 + $0x280] sm:$0xff]
    %v358 = vld [vmem:[#allocation6 + $0x288] sm:$0xff]
    %v359 = vld [vmem:[#allocation6 + $0x290] sm:$0xff]
    %v360 = vld [vmem:[#allocation6 + $0x298] sm:$0xff]
    %v361 = vld [vmem:[#allocation6 + $0x2a0] sm:$0xff]
    %v362 = vld [vmem:[#allocation6 + $0x2a8] sm:$0xff]
    %v363 = vld [vmem:[#allocation6 + $0x2b0] sm:$0xff]
    %v364 = vld [vmem:[#allocation6 + $0x2b8] sm:$0xff]
    %v365 = vld [vmem:[#allocation6 + $0x2c0] sm:$0xff]
    %v366 = vld [vmem:[#allocation6 + $0x2c8] sm:$0xff]
    %v367 = vld [vmem:[#allocation6 + $0x2d0] sm:$0xff]
    %v368 = vld [vmem:[#allocation6 + $0x2d8] sm:$0xff]
    %v369 = vld [vmem:[#allocation6 + $0x2e0] sm:$0xff]
    %v370 = vld [vmem:[#allocation6 + $0x2e8] sm:$0xff]
    %v371 = vld [vmem:[#allocation6 + $0x2f0] sm:$0xff]
    %v372 = vld [vmem:[#allocation6 + $0x2f8] sm:$0xff]
    %v373 = vld [vmem:[#allocation6 + $0x300] sm:$0xff]
    %v374 = vld [vmem:[#allocation6 + $0x308] sm:$0xff]
    %v375 = vld [vmem:[#allocation6 + $0x310] sm:$0xff]
    %v376 = vld [vmem:[#allocation6 + $0x318] sm:$0xff]
    %v377 = vld [vmem:[#allocation6 + $0x320] sm:$0xff]
    %v378 = vld [vmem:[#allocation6 + $0x328] sm:$0xff]
    %v379 = vld [vmem:[#allocation6 + $0x330] sm:$0xff]
    %v380 = vld [vmem:[#allocation6 + $0x338] sm:$0xff]
    %v381 = vld [vmem:[#allocation6 + $0x340] sm:$0xff]
    %v382 = vld [vmem:[#allocation6 + $0x348] sm:$0xff]
    %v383 = vld [vmem:[#allocation6 + $0x350] sm:$0xff]
    %v384 = vld [vmem:[#allocation6 + $0x358] sm:$0xff]
    %v385 = vld [vmem:[#allocation6 + $0x360] sm:$0xff]
    %v386 = vld [vmem:[#allocation6 + $0x368] sm:$0xff]
    %v387 = vld [vmem:[#allocation6 + $0x370] sm:$0xff]
    %v388 = vld [vmem:[#allocation6 + $0x378] sm:$0xff]
    %v389 = vld [vmem:[#allocation6 + $0x380] sm:$0xff]
    %v390 = vld [vmem:[#allocation6 + $0x388] sm:$0xff]
    %v391 = vld [vmem:[#allocation6 + $0x390] sm:$0xff]
    %v392 = vld [vmem:[#allocation6 + $0x398] sm:$0xff]
    %v393 = vld [vmem:[#allocation6 + $0x3a0] sm:$0xff]
    %v394 = vld [vmem:[#allocation6 + $0x3a8] sm:$0xff]
    %v395 = vld [vmem:[#allocation6 + $0x3b0] sm:$0xff]
    %v396 = vld [vmem:[#allocation6 + $0x3b8] sm:$0xff]
    %v397 = vld [vmem:[#allocation6 + $0x3c0] sm:$0xff]
    %v398 = vld [vmem:[#allocation6 + $0x3c8] sm:$0xff]
    %v399 = vld [vmem:[#allocation6 + $0x3d0] sm:$0xff]
    %v400 = vld [vmem:[#allocation6 + $0x3d8] sm:$0xff]
    %v401 = vld [vmem:[#allocation6 + $0x3e0] sm:$0xff]
    %v402 = vld [vmem:[#allocation6 + $0x3e8] sm:$0xff]
    %v403 = vld [vmem:[#allocation6 + $0x3f0] sm:$0xff]
    %v404 = vld [vmem:[#allocation6 + $0x3f8] sm:$0xff]
    %v405 = vld [vmem:[#allocation6 + $0x400] sm:$0xff]
    %v406 = vld [vmem:[#allocation6 + $0x408] sm:$0xff]
    %v407 = vld [vmem:[#allocation6 + $0x410] sm:$0xff]
    %v408 = vld [vmem:[#allocation6 + $0x418] sm:$0xff]
    %v409 = vld [vmem:[#allocation6 + $0x420] sm:$0xff]
    %v410 = vld [vmem:[#allocation6 + $0x428] sm:$0xff]
    %v411 = vld [vmem:[#allocation6 + $0x430] sm:$0xff]
    %v412 = vld [vmem:[#allocation6 + $0x438] sm:$0xff]
    %v413 = vld [vmem:[#allocation6 + $0x440] sm:$0xff]
    %v414 = vld [vmem:[#allocation6 + $0x448] sm:$0xff]
    %v415 = vld [vmem:[#allocation6 + $0x450] sm:$0xff]
    %v416 = vld [vmem:[#allocation6 + $0x458] sm:$0xff]
    %v417 = vld [vmem:[#allocation6 + $0x460] sm:$0xff]
    %v418 = vld [vmem:[#allocation6 + $0x468] sm:$0xff]
    %v419 = vld [vmem:[#allocation6 + $0x470] sm:$0xff]
    %v420 = vld [vmem:[#allocation6 + $0x478] sm:$0xff]
    %v421 = vld [vmem:[#allocation6 + $0x480] sm:$0xff]
    %v422 = vld [vmem:[#allocation6 + $0x488] sm:$0xff]
    %v423 = vld [vmem:[#allocation6 + $0x490] sm:$0xff]
    %v424 = vld [vmem:[#allocation6 + $0x498] sm:$0xff]
    %v425 = vld [vmem:[#allocation6 + $0x4a0] sm:$0xff]
    %v426 = vld [vmem:[#allocation6 + $0x4a8] sm:$0xff]
    %v427 = vld [vmem:[#allocation6 + $0x4b0] sm:$0xff]
    %v428 = vld [vmem:[#allocation6 + $0x4b8] sm:$0xff]
    %v429 = vld [vmem:[#allocation6 + $0x4c0] sm:$0xff]
    %v430 = vld [vmem:[#allocation6 + $0x4c8] sm:$0xff]
    %v431 = vld [vmem:[#allocation6 + $0x4d0] sm:$0xff]
    %v432 = vld [vmem:[#allocation6 + $0x4d8] sm:$0xff]
    %v433 = vld [vmem:[#allocation6 + $0x4e0] sm:$0xff]
    %v434 = vld [vmem:[#allocation6 + $0x4e8] sm:$0xff]
    %v435 = vld [vmem:[#allocation6 + $0x4f0] sm:$0xff]
    %v436 = vld [vmem:[#allocation6 + $0x4f8] sm:$0xff]
    %437 = vmatprep.subr.mxu0 %v278
    %438 = vmatpush1.xpose.msra.mxu0 %v277
    %439 = vmatprep.subr.mxu0 %v280
    %440 = vmatpush1.xpose.msra.mxu0 %v279
    %441 = vmatprep.subr.mxu0 %v282
    %442 = vmatpush1.xpose.msra.mxu0 %v281
    %443 = vmatprep.subr.mxu0 %v284
    %444 = vmatpush1.xpose.msra.mxu0 %v283
    %445 = vmatprep.subr.mxu0 %v286
    %446 = vmatpush1.xpose.msra.mxu0 %v285
    %447 = vmatprep.subr.mxu0 %v288
    %448 = vmatpush1.xpose.msra.mxu0 %v287
    %449 = vmatprep.subr.mxu0 %v290
    %450 = vmatpush1.xpose.msra.mxu0 %v289
    %451 = vmatprep.subr.mxu0 %v292
    %452 = vmatpush1.xpose.msra.mxu0 %v291
    %453 = vmatprep.subr.mxu0 %v294
    %454 = vmatpush1.xpose.msra.mxu0 %v293
    %455 = vmatprep.subr.mxu0 %v296
    %456 = vmatpush1.xpose.msra.mxu0 %v295
    %457 = vmatprep.subr.mxu0 %v298
    %458 = vmatpush1.xpose.msra.mxu0 %v297
    %459 = vmatprep.subr.mxu0 %v300
    %460 = vmatpush1.xpose.msra.mxu0 %v299
    %461 = vmatprep.subr.mxu0 %v302
    %462 = vmatpush1.xpose.msra.mxu0 %v301
    %463 = vmatprep.subr.mxu0 %v304
    %464 = vmatpush1.xpose.msra.mxu0 %v303
    %465 = vmatprep.subr.mxu0 %v306
    %466 = vmatpush1.xpose.msra.mxu0 %v305
    %467 = vmatprep.subr.mxu0 %v308
    %468 = vmatpush1.xpose.msra.mxu0 %v307
    %469 = vmatprep.subr.mxu0 %v310
    %470 = vmatpush1.xpose.msra.mxu0 %v309
    %471 = vmatprep.subr.mxu0 %v312
    %472 = vmatpush1.xpose.msra.mxu0 %v311
    %473 = vmatprep.subr.mxu0 %v314
    %474 = vmatpush1.xpose.msra.mxu0 %v313
    %475 = vmatprep.subr.mxu0 %v316
    %476 = vmatpush1.xpose.msra.mxu0 %v315
    %477 = vmatprep.subr.mxu0 %v318
    %478 = vmatpush1.xpose.msra.mxu0 %v317
    %479 = vmatprep.subr.mxu0 %v320
    %480 = vmatpush1.xpose.msra.mxu0 %v319
    %481 = vmatprep.subr.mxu0 %v322
    %482 = vmatpush1.xpose.msra.mxu0 %v321
    %483 = vmatprep.subr.mxu0 %v324
    %484 = vmatpush1.xpose.msra.mxu0 %v323
    %485 = vmatprep.subr.mxu0 %v326
    %486 = vmatpush1.xpose.msra.mxu0 %v325
    %487 = vmatprep.subr.mxu0 %v328
    %488 = vmatpush1.xpose.msra.mxu0 %v327
    %489 = vmatprep.subr.mxu0 %v330
    %490 = vmatpush1.xpose.msra.mxu0 %v329
    %491 = vmatprep.subr.mxu0 %v332
    %492 = vmatpush1.xpose.msra.mxu0 %v331
    %493 = vmatprep.subr.mxu0 %v334
    %494 = vmatpush1.xpose.msra.mxu0 %v333
    %495 = vmatprep.subr.mxu0 %v336
    %496 = vmatpush1.xpose.msra.mxu0 %v335
    %497 = vmatprep.subr.mxu0 %v338
    %498 = vmatpush1.xpose.msra.mxu0 %v337
    %499 = vmatprep.subr.mxu0 %v340
    %500 = vmatpush1.xpose.msra.mxu0 %v339
    %501 = vmatprep.mubr.f32.mxu0 %v269
    %502 = vmatmul.mubr.f32.gmra.mrb[0].mxu0 %v267
    %v503 = vpop.f32.mrb[0].mxu0
    %v504 = vadd.f32 0.0, %v503
    %v505 = vpop.f32.mrb[0].mxu0
    %v506 = vadd.f32 0.0, %v505
    %507 = vmatprep.mubr.f32.mxu0 %v275
    %508 = vmatmul.mubr.f32.gmra.mrb[0].mxu0 %v273
    %v509 = vpop.f32.mrb[0].mxu0
    %v510 = vadd.f32 0.0, %v509
    %v511 = vpop.f32.mrb[0].mxu0
    %v512 = vadd.f32 0.0, %v511
    %513 = vdwg.mxu0
    %514 = vmatprep.subr.mxu0 %v342
    %515 = vmatpush1.xpose.msra.mxu0 %v341
    %516 = vmatprep.subr.mxu0 %v344
    %517 = vmatpush1.xpose.msra.mxu0 %v343
    %518 = vmatprep.subr.mxu0 %v346
    %519 = vmatpush1.xpose.msra.mxu0 %v345
    %520 = vmatprep.subr.mxu0 %v348
    %521 = vmatpush1.xpose.msra.mxu0 %v347
    %522 = vmatprep.subr.mxu0 %v350
    %523 = vmatpush1.xpose.msra.mxu0 %v349
    %524 = vmatprep.subr.mxu0 %v352
    %525 = vmatpush1.xpose.msra.mxu0 %v351
    %526 = vmatprep.subr.mxu0 %v354
    %527 = vmatpush1.xpose.msra.mxu0 %v353
    %528 = vmatprep.subr.mxu0 %v356
    %529 = vmatpush1.xpose.msra.mxu0 %v355
    %530 = vmatprep.subr.mxu0 %v358
    %531 = vmatpush1.xpose.msra.mxu0 %v357
    %532 = vmatprep.subr.mxu0 %v360
    %533 = vmatpush1.xpose.msra.mxu0 %v359
    %534 = vmatprep.subr.mxu0 %v362
    %535 = vmatpush1.xpose.msra.mxu0 %v361
    %536 = vmatprep.subr.mxu0 %v364
    %537 = vmatpush1.xpose.msra.mxu0 %v363
    %538 = vmatprep.subr.mxu0 %v366
    %539 = vmatpush1.xpose.msra.mxu0 %v365
    %540 = vmatprep.subr.mxu0 %v368
    %541 = vmatpush1.xpose.msra.mxu0 %v367
    %542 = vmatprep.subr.mxu0 %v370
    %543 = vmatpush1.xpose.msra.mxu0 %v369
    %544 = vmatprep.subr.mxu0 %v372
    %545 = vmatpush1.xpose.msra.mxu0 %v371
    %546 = vmatprep.subr.mxu0 %v374
    %547 = vmatpush1.xpose.msra.mxu0 %v373
    %548 = vmatprep.subr.mxu0 %v376
    %549 = vmatpush1.xpose.msra.mxu0 %v375
    %550 = vmatprep.subr.mxu0 %v378
    %551 = vmatpush1.xpose.msra.mxu0 %v377
    %552 = vmatprep.subr.mxu0 %v380
    %553 = vmatpush1.xpose.msra.mxu0 %v379
    %554 = vmatprep.subr.mxu0 %v382
    %555 = vmatpush1.xpose.msra.mxu0 %v381
    %556 = vmatprep.subr.mxu0 %v384
    %557 = vmatpush1.xpose.msra.mxu0 %v383
    %558 = vmatprep.subr.mxu0 %v386
    %559 = vmatpush1.xpose.msra.mxu0 %v385
    %560 = vmatprep.subr.mxu0 %v388
    %561 = vmatpush1.xpose.msra.mxu0 %v387
    %562 = vmatprep.subr.mxu0 %v390
    %563 = vmatpush1.xpose.msra.mxu0 %v389
    %564 = vmatprep.subr.mxu0 %v392
    %565 = vmatpush1.xpose.msra.mxu0 %v391
    %566 = vmatprep.subr.mxu0 %v394
    %567 = vmatpush1.xpose.msra.mxu0 %v393
    %568 = vmatprep.subr.mxu0 %v396
    %569 = vmatpush1.xpose.msra.mxu0 %v395
    %570 = vmatprep.subr.mxu0 %v398
    %571 = vmatpush1.xpose.msra.mxu0 %v397
    %572 = vmatprep.subr.mxu0 %v400
    %573 = vmatpush1.xpose.msra.mxu0 %v399
    %574 = vmatprep.subr.mxu0 %v402
    %575 = vmatpush1.xpose.msra.mxu0 %v401
    %576 = vmatprep.subr.mxu0 %v404
    %577 = vmatpush1.xpose.msra.mxu0 %v403
    %578 = vmatprep.mubr.f32.mxu0 %v269
    %579 = vmatmul.mubr.f32.gmra.mrb[0].mxu0 %v267
    %v580 = vpop.f32.mrb[0].mxu0
    %v581 = vadd.f32 0.0, %v580
    %v582 = vpop.f32.mrb[0].mxu0
    %v583 = vadd.f32 0.0, %v582
    %584 = vmatprep.mubr.f32.mxu0 %v275
    %585 = vmatmul.mubr.f32.gmra.mrb[0].mxu0 %v273
    %v586 = vpop.f32.mrb[0].mxu0
    %v587 = vadd.f32 0.0, %v586
    %v588 = vpop.f32.mrb[0].mxu0
    %v589 = vadd.f32 0.0, %v588
    %590 = vdwg.mxu0
    %591 = vmatprep.subr.mxu0 %v406
    %592 = vmatpush1.xpose.msra.mxu0 %v405
    %593 = vmatprep.subr.mxu0 %v408
    %594 = vmatpush1.xpose.msra.mxu0 %v407
    %595 = vmatprep.subr.mxu0 %v410
    %596 = vmatpush1.xpose.msra.mxu0 %v409
    %597 = vmatprep.subr.mxu0 %v412
    %598 = vmatpush1.xpose.msra.mxu0 %v411
    %599 = vmatprep.subr.mxu0 %v414
    %600 = vmatpush1.xpose.msra.mxu0 %v413
    %601 = vmatprep.subr.mxu0 %v416
    %602 = vmatpush1.xpose.msra.mxu0 %v415
    %603 = vmatprep.subr.mxu0 %v418
    %604 = vmatpush1.xpose.msra.mxu0 %v417
    %605 = vmatprep.subr.mxu0 %v420
    %606 = vmatpush1.xpose.msra.mxu0 %v419
    %607 = vmatprep.subr.mxu0 %v422
    %608 = vmatpush1.xpose.msra.mxu0 %v421
    %609 = vmatprep.subr.mxu0 %v424
    %610 = vmatpush1.xpose.msra.mxu0 %v423
    %611 = vmatprep.subr.mxu0 %v426
    %612 = vmatpush1.xpose.msra.mxu0 %v425
    %613 = vmatprep.subr.mxu0 %v428
    %614 = vmatpush1.xpose.msra.mxu0 %v427
    %615 = vmatprep.subr.mxu0 %v430
    %616 = vmatpush1.xpose.msra.mxu0 %v429
    %617 = vmatprep.subr.mxu0 %v432
    %618 = vmatpush1.xpose.msra.mxu0 %v431
    %619 = vmatprep.subr.mxu0 %v434
    %620 = vmatpush1.xpose.msra.mxu0 %v433
    %621 = vmatprep.subr.mxu0 %v436
    %622 = vmatpush1.xpose.msra.mxu0 %v435
    %623 = vmatprep.subr.mxu0 0.0
    %624 = vmatpush1.xpose.msra.mxu0 0.0
    %625 = vmatprep.subr.mxu0 0.0
    %626 = vmatpush1.xpose.msra.mxu0 0.0
    %627 = vmatprep.subr.mxu0 0.0
    %628 = vmatpush1.xpose.msra.mxu0 0.0
    %629 = vmatprep.subr.mxu0 0.0
    %630 = vmatpush1.xpose.msra.mxu0 0.0
    %631 = vmatprep.subr.mxu0 0.0
    %632 = vmatpush1.xpose.msra.mxu0 0.0
    %633 = vmatprep.subr.mxu0 0.0
    %634 = vmatpush1.xpose.msra.mxu0 0.0
    %635 = vmatprep.subr.mxu0 0.0
    %636 = vmatpush1.xpose.msra.mxu0 0.0
    %637 = vmatprep.subr.mxu0 0.0
    %638 = vmatpush1.xpose.msra.mxu0 0.0
    %639 = vmatprep.subr.mxu0 0.0
    %640 = vmatpush1.xpose.msra.mxu0 0.0
    %641 = vmatprep.subr.mxu0 0.0
    %642 = vmatpush1.xpose.msra.mxu0 0.0
    %643 = vmatprep.subr.mxu0 0.0
    %644 = vmatpush1.xpose.msra.mxu0 0.0
    %645 = vmatprep.subr.mxu0 0.0
    %646 = vmatpush1.xpose.msra.mxu0 0.0
    %647 = vmatprep.subr.mxu0 0.0
    %648 = vmatpush1.xpose.msra.mxu0 0.0
    %649 = vmatprep.subr.mxu0 0.0
    %650 = vmatpush1.xpose.msra.mxu0 0.0
    %651 = vmatprep.subr.mxu0 0.0
    %652 = vmatpush1.xpose.msra.mxu0 0.0
    %653 = vmatprep.subr.mxu0 0.0
    %654 = vmatpush1.xpose.msra.mxu0 0.0
    %655 = vmatprep.mubr.f32.mxu0 %v269
    %656 = vmatmul.mubr.f32.gmra.mrb[0].mxu0 %v267
    %v657 = vpop.f32.mrb[0].mxu0
    %v658 = vadd.f32 0.0, %v657
    %v659 = vpop.f32.mrb[0].mxu0
    %660 = vmatprep.mubr.f32.mxu0 %v275
    %661 = vmatmul.mubr.f32.gmra.mrb[0].mxu0 %v273
    %v662 = vpop.f32.mrb[0].mxu0
    %v663 = vadd.f32 0.0, %v662
    %v664 = vpop.f32.mrb[0].mxu0
    %665 = vdwg.mxu0
    %666 = vmatprep.subr.mxu0 0.0
    %667 = vmatpush1.xpose.msra.mxu0 %v504
    %668 = vmatprep.subr.mxu0 0.0
    %669 = vmatpush1.xpose.msra.mxu0 0.0
    %670 = vmatprep.subr.mxu0 0.0
    %671 = vmatpush1.xpose.msra.mxu0 0.0
    %672 = vmatprep.subr.mxu0 0.0
    %673 = vmatpush1.xpose.msra.mxu0 0.0
    %674 = vmatprep.subr.mxu0 0.0
    %675 = vmatpush1.xpose.msra.mxu0 0.0
    %676 = vmatprep.subr.mxu0 0.0
    %677 = vmatpush1.xpose.msra.mxu0 0.0
    %678 = vmatprep.subr.mxu0 0.0
    %679 = vmatpush1.xpose.msra.mxu0 0.0
    %680 = vmatprep.subr.mxu0 0.0
    %681 = vmatpush1.xpose.msra.mxu0 0.0
    %682 = vmatprep.subr.mxu0 0.0
    %683 = vmatpush1.xpose.msra.mxu0 0.0
    %684 = vmatprep.subr.mxu0 0.0
    %685 = vmatpush1.xpose.msra.mxu0 0.0
    %686 = vmatprep.subr.mxu0 0.0
    %687 = vmatpush1.xpose.msra.mxu0 0.0
    %688 = vmatprep.subr.mxu0 0.0
    %689 = vmatpush1.xpose.msra.mxu0 0.0
    %690 = vmatprep.subr.mxu0 0.0
    %691 = vmatpush1.xpose.msra.mxu0 0.0
    %692 = vmatprep.subr.mxu0 0.0
    %693 = vmatpush1.xpose.msra.mxu0 0.0
    %694 = vmatprep.subr.mxu0 0.0
    %695 = vmatpush1.xpose.msra.mxu0 0.0
    %696 = vmatprep.subr.mxu0 0.0
    %697 = vmatpush1.xpose.msra.mxu0 0.0
    %698 = vmatprep.subr.mxu0 0.0
    %699 = vmatpush1.xpose.msra.mxu0 0.0
    %700 = vmatprep.subr.mxu0 0.0
    %701 = vmatpush1.xpose.msra.mxu0 0.0
    %702 = vmatprep.subr.mxu0 0.0
    %703 = vmatpush1.xpose.msra.mxu0 0.0
    %704 = vmatprep.subr.mxu0 0.0
    %705 = vmatpush1.xpose.msra.mxu0 0.0
    %706 = vmatprep.subr.mxu0 0.0
    %707 = vmatpush1.xpose.msra.mxu0 0.0
    %708 = vmatprep.subr.mxu0 0.0
    %709 = vmatpush1.xpose.msra.mxu0 0.0
    %710 = vmatprep.subr.mxu0 0.0
    %711 = vmatpush1.xpose.msra.mxu0 0.0
    %712 = vmatprep.subr.mxu0 0.0
    %713 = vmatpush1.xpose.msra.mxu0 0.0
    %714 = vmatprep.subr.mxu0 0.0
    %715 = vmatpush1.xpose.msra.mxu0 0.0
    %716 = vmatprep.subr.mxu0 0.0
    %717 = vmatpush1.xpose.msra.mxu0 0.0
    %718 = vmatprep.subr.mxu0 0.0
    %719 = vmatpush1.xpose.msra.mxu0 0.0
    %720 = vmatprep.subr.mxu0 0.0
    %721 = vmatpush1.xpose.msra.mxu0 0.0
    %722 = vmatprep.subr.mxu0 0.0
    %723 = vmatpush1.xpose.msra.mxu0 0.0
    %724 = vmatprep.subr.mxu0 0.0
    %725 = vmatpush1.xpose.msra.mxu0 0.0
    %726 = vmatprep.subr.mxu0 0.0
    %727 = vmatpush1.xpose.msra.mxu0 0.0
    %728 = vmatprep.subr.mxu0 0.0
    %729 = vmatpush1.xpose.msra.mxu0 0.0
    %730 = vmatprep.mubr.f32.mxu0 0.0
    %731 = vmatmul.mubr.f32.gmra.mrb[0].mxu0 %v190
    %v732 = vpop.f32.mrb[0].mxu0
    %v733 = vadd.f32 0.0, %v732
    %v734 = vpop.f32.mrb[0].mxu0
    %735 = vdwg.mxu0
    %v737 = vrot.slane %v733, 1
    %738 = vrot.lane.b32.xlu0 %v737, 8
    %v739 = vpop.permute.xlu0 %738
    %v741 = vrot.slane %v733, 2
    %742 = vrot.lane.b32.xlu0 %v741, 16
    %v743 = vpop.permute.xlu0 %742
    %v745 = vrot.slane %v733, 3
    %746 = vrot.lane.b32.xlu0 %v745, 24
    %v747 = vpop.permute.xlu0 %746
    %v749 = vrot.slane %v733, 4
    %750 = vrot.lane.b32.xlu0 %v749, 32
    %v751 = vpop.permute.xlu0 %750
    %v753 = vrot.slane %v733, 5
    %754 = vrot.lane.b32.xlu0 %v753, 40
    %v755 = vpop.permute.xlu0 %754
    %v757 = vrot.slane %v733, 6
    %758 = vrot.lane.b32.xlu0 %v757, 48
    %v759 = vpop.permute.xlu0 %758
    %v761 = vrot.slane %v733, 7
    %762 = vrot.lane.b32.xlu0 %v761, 56
    %v763 = vpop.permute.xlu0 %762
    %vm765 = vcmask 64512
    %v766 = vsel %vm765, %v733, %v739
    %vm767 = vcmask 130048
    %v768 = vsel %vm767, %v766, %v743
    %vm769 = vcmask 195584
    %v770 = vsel %vm769, %v768, %v747
    %vm771 = vcmask 261120
    %v772 = vsel %vm771, %v770, %v751
    %vm773 = vcmask 326656
    %v774 = vsel %vm773, %v772, %v755
    %vm775 = vcmask 392192
    %v776 = vsel %vm775, %v774, %v759
    %vm777 = vcmask 457728
    %v778 = vsel %vm777, %v776, %v763
    %vm779 = vcmask 516096
    %780 = vst.msk [vmem:[%s3] sm:$0x1] %vm779, %v778
    %781 = vmatprep.subr.mxu0 0.0
    %782 = vmatpush1.xpose.msra.mxu0 %v506
    %783 = vmatprep.subr.mxu0 0.0
    %784 = vmatpush1.xpose.msra.mxu0 0.0
    %785 = vmatprep.subr.mxu0 0.0
    %786 = vmatpush1.xpose.msra.mxu0 0.0
    %787 = vmatprep.subr.mxu0 0.0
    %788 = vmatpush1.xpose.msra.mxu0 0.0
    %789 = vmatprep.subr.mxu0 0.0
    %790 = vmatpush1.xpose.msra.mxu0 0.0
    %791 = vmatprep.subr.mxu0 0.0
    %792 = vmatpush1.xpose.msra.mxu0 0.0
    %793 = vmatprep.subr.mxu0 0.0
    %794 = vmatpush1.xpose.msra.mxu0 0.0
    %795 = vmatprep.subr.mxu0 0.0
    %796 = vmatpush1.xpose.msra.mxu0 0.0
    %797 = vmatprep.subr.mxu0 0.0
    %798 = vmatpush1.xpose.msra.mxu0 0.0
    %799 = vmatprep.subr.mxu0 0.0
    %800 = vmatpush1.xpose.msra.mxu0 0.0
    %801 = vmatprep.subr.mxu0 0.0
    %802 = vmatpush1.xpose.msra.mxu0 0.0
    %803 = vmatprep.subr.mxu0 0.0
    %804 = vmatpush1.xpose.msra.mxu0 0.0
    %805 = vmatprep.subr.mxu0 0.0
    %806 = vmatpush1.xpose.msra.mxu0 0.0
    %807 = vmatprep.subr.mxu0 0.0
    %808 = vmatpush1.xpose.msra.mxu0 0.0
    %809 = vmatprep.subr.mxu0 0.0
    %810 = vmatpush1.xpose.msra.mxu0 0.0
    %811 = vmatprep.subr.mxu0 0.0
    %812 = vmatpush1.xpose.msra.mxu0 0.0
    %813 = vmatprep.subr.mxu0 0.0
    %814 = vmatpush1.xpose.msra.mxu0 0.0
    %815 = vmatprep.subr.mxu0 0.0
    %816 = vmatpush1.xpose.msra.mxu0 0.0
    %817 = vmatprep.subr.mxu0 0.0
    %818 = vmatpush1.xpose.msra.mxu0 0.0
    %819 = vmatprep.subr.mxu0 0.0
    %820 = vmatpush1.xpose.msra.mxu0 0.0
    %821 = vmatprep.subr.mxu0 0.0
    %822 = vmatpush1.xpose.msra.mxu0 0.0
    %823 = vmatprep.subr.mxu0 0.0
    %824 = vmatpush1.xpose.msra.mxu0 0.0
    %825 = vmatprep.subr.mxu0 0.0
    %826 = vmatpush1.xpose.msra.mxu0 0.0
    %827 = vmatprep.subr.mxu0 0.0
    %828 = vmatpush1.xpose.msra.mxu0 0.0
    %829 = vmatprep.subr.mxu0 0.0
    %830 = vmatpush1.xpose.msra.mxu0 0.0
    %831 = vmatprep.subr.mxu0 0.0
    %832 = vmatpush1.xpose.msra.mxu0 0.0
    %833 = vmatprep.subr.mxu0 0.0
    %834 = vmatpush1.xpose.msra.mxu0 0.0
    %835 = vmatprep.subr.mxu0 0.0
    %836 = vmatpush1.xpose.msra.mxu0 0.0
    %837 = vmatprep.subr.mxu0 0.0
    %838 = vmatpush1.xpose.msra.mxu0 0.0
    %839 = vmatprep.subr.mxu0 0.0
    %840 = vmatpush1.xpose.msra.mxu0 0.0
    %841 = vmatprep.subr.mxu0 0.0
    %842 = vmatpush1.xpose.msra.mxu0 0.0
    %843 = vmatprep.subr.mxu0 0.0
    %844 = vmatpush1.xpose.msra.mxu0 0.0
    %845 = vmatprep.mubr.f32.mxu0 0.0
    %846 = vmatmul.mubr.f32.gmra.mrb[0].mxu0 %v192
    %v847 = vpop.f32.mrb[0].mxu0
    %v848 = vadd.f32 0.0, %v847
    %v849 = vpop.f32.mrb[0].mxu0
    %850 = vdwg.mxu0
    %v852 = vrot.slane %v848, 1
    %853 = vrot.lane.b32.xlu0 %v852, 8
    %v854 = vpop.permute.xlu0 %853
    %v856 = vrot.slane %v848, 2
    %857 = vrot.lane.b32.xlu0 %v856, 16
    %v858 = vpop.permute.xlu0 %857
    %v860 = vrot.slane %v848, 3
    %861 = vrot.lane.b32.xlu0 %v860, 24
    %v862 = vpop.permute.xlu0 %861
    %v864 = vrot.slane %v848, 4
    %865 = vrot.lane.b32.xlu0 %v864, 32
    %v866 = vpop.permute.xlu0 %865
    %v868 = vrot.slane %v848, 5
    %869 = vrot.lane.b32.xlu0 %v868, 40
    %v870 = vpop.permute.xlu0 %869
    %v872 = vrot.slane %v848, 6
    %873 = vrot.lane.b32.xlu0 %v872, 48
    %v874 = vpop.permute.xlu0 %873
    %v876 = vrot.slane %v848, 7
    %877 = vrot.lane.b32.xlu0 %v876, 56
    %v878 = vpop.permute.xlu0 %877
    %v880 = vsel %vm765, %v848, %v854
    %v881 = vsel %vm767, %v880, %v858
    %v882 = vsel %vm769, %v881, %v862
    %v883 = vsel %vm771, %v882, %v866
    %v884 = vsel %vm773, %v883, %v870
    %v885 = vsel %vm775, %v884, %v874
    %v886 = vsel %vm777, %v885, %v878
    %887 = vmatprep.subr.mxu0 0.0
    %888 = vmatpush1.xpose.msra.mxu0 %v581
    %889 = vmatprep.subr.mxu0 0.0
    %890 = vmatpush1.xpose.msra.mxu0 0.0
    %891 = vmatprep.subr.mxu0 0.0
    %892 = vmatpush1.xpose.msra.mxu0 0.0
    %893 = vmatprep.subr.mxu0 0.0
    %894 = vmatpush1.xpose.msra.mxu0 0.0
    %895 = vmatprep.subr.mxu0 0.0
    %896 = vmatpush1.xpose.msra.mxu0 0.0
    %897 = vmatprep.subr.mxu0 0.0
    %898 = vmatpush1.xpose.msra.mxu0 0.0
    %899 = vmatprep.subr.mxu0 0.0
    %900 = vmatpush1.xpose.msra.mxu0 0.0
    %901 = vmatprep.subr.mxu0 0.0
    %902 = vmatpush1.xpose.msra.mxu0 0.0
    %903 = vmatprep.subr.mxu0 0.0
    %904 = vmatpush1.xpose.msra.mxu0 0.0
    %905 = vmatprep.subr.mxu0 0.0
    %906 = vmatpush1.xpose.msra.mxu0 0.0
    %907 = vmatprep.subr.mxu0 0.0
    %908 = vmatpush1.xpose.msra.mxu0 0.0
    %909 = vmatprep.subr.mxu0 0.0
    %910 = vmatpush1.xpose.msra.mxu0 0.0
    %911 = vmatprep.subr.mxu0 0.0
    %912 = vmatpush1.xpose.msra.mxu0 0.0
    %913 = vmatprep.subr.mxu0 0.0
    %914 = vmatpush1.xpose.msra.mxu0 0.0
    %915 = vmatprep.subr.mxu0 0.0
    %916 = vmatpush1.xpose.msra.mxu0 0.0
    %917 = vmatprep.subr.mxu0 0.0
    %918 = vmatpush1.xpose.msra.mxu0 0.0
    %919 = vmatprep.subr.mxu0 0.0
    %920 = vmatpush1.xpose.msra.mxu0 0.0
    %921 = vmatprep.subr.mxu0 0.0
    %922 = vmatpush1.xpose.msra.mxu0 0.0
    %923 = vmatprep.subr.mxu0 0.0
    %924 = vmatpush1.xpose.msra.mxu0 0.0
    %925 = vmatprep.subr.mxu0 0.0
    %926 = vmatpush1.xpose.msra.mxu0 0.0
    %927 = vmatprep.subr.mxu0 0.0
    %928 = vmatpush1.xpose.msra.mxu0 0.0
    %929 = vmatprep.subr.mxu0 0.0
    %930 = vmatpush1.xpose.msra.mxu0 0.0
    %931 = vmatprep.subr.mxu0 0.0
    %932 = vmatpush1.xpose.msra.mxu0 0.0
    %933 = vmatprep.subr.mxu0 0.0
    %934 = vmatpush1.xpose.msra.mxu0 0.0
    %935 = vmatprep.subr.mxu0 0.0
    %936 = vmatpush1.xpose.msra.mxu0 0.0
    %937 = vmatprep.subr.mxu0 0.0
    %938 = vmatpush1.xpose.msra.mxu0 0.0
    %939 = vmatprep.subr.mxu0 0.0
    %940 = vmatpush1.xpose.msra.mxu0 0.0
    %941 = vmatprep.subr.mxu0 0.0
    %942 = vmatpush1.xpose.msra.mxu0 0.0
    %943 = vmatprep.subr.mxu0 0.0
    %944 = vmatpush1.xpose.msra.mxu0 0.0
    %945 = vmatprep.subr.mxu0 0.0
    %946 = vmatpush1.xpose.msra.mxu0 0.0
    %947 = vmatprep.subr.mxu0 0.0
    %948 = vmatpush1.xpose.msra.mxu0 0.0
    %949 = vmatprep.subr.mxu0 0.0
    %950 = vmatpush1.xpose.msra.mxu0 0.0
    %951 = vmatprep.mubr.f32.mxu0 0.0
    %952 = vmatmul.mubr.f32.gmra.mrb[0].mxu0 %v192
    %v953 = vpop.f32.mrb[0].mxu0
    %v954 = vadd.f32 0.0, %v953
    %v955 = vpop.f32.mrb[0].mxu0
    %956 = vdwg.mxu0
    %v958 = vrot.slane %v954, 1
    %959 = vrot.lane.b32.xlu0 %v958, 8
    %v960 = vpop.permute.xlu0 %959
    %v962 = vrot.slane %v954, 2
    %963 = vrot.lane.b32.xlu0 %v962, 16
    %v964 = vpop.permute.xlu0 %963
    %v966 = vrot.slane %v954, 3
    %967 = vrot.lane.b32.xlu0 %v966, 24
    %v968 = vpop.permute.xlu0 %967
    %v970 = vrot.slane %v954, 4
    %971 = vrot.lane.b32.xlu0 %v970, 32
    %v972 = vpop.permute.xlu0 %971
    %v974 = vrot.slane %v954, 5
    %975 = vrot.lane.b32.xlu0 %v974, 40
    %v976 = vpop.permute.xlu0 %975
    %v978 = vrot.slane %v954, 6
    %979 = vrot.lane.b32.xlu0 %v978, 48
    %v980 = vpop.permute.xlu0 %979
    %v982 = vrot.slane %v954, 7
    %983 = vrot.lane.b32.xlu0 %v982, 56
    %v984 = vpop.permute.xlu0 %983
    %v986 = vsel %vm765, %v954, %v960
    %v987 = vsel %vm767, %v986, %v964
    %v988 = vsel %vm769, %v987, %v968
    %v989 = vsel %vm771, %v988, %v972
    %v990 = vsel %vm773, %v989, %v976
    %v991 = vsel %vm775, %v990, %v980
    %v992 = vsel %vm777, %v991, %v984
    %993 = vmatprep.subr.mxu0 0.0
    %994 = vmatpush1.xpose.msra.mxu0 %v583
    %995 = vmatprep.subr.mxu0 0.0
    %996 = vmatpush1.xpose.msra.mxu0 0.0
    %997 = vmatprep.subr.mxu0 0.0
    %998 = vmatpush1.xpose.msra.mxu0 0.0
    %999 = vmatprep.subr.mxu0 0.0
    %1000 = vmatpush1.xpose.msra.mxu0 0.0
    %1001 = vmatprep.subr.mxu0 0.0
    %1002 = vmatpush1.xpose.msra.mxu0 0.0
    %1003 = vmatprep.subr.mxu0 0.0
    %1004 = vmatpush1.xpose.msra.mxu0 0.0
    %1005 = vmatprep.subr.mxu0 0.0
    %1006 = vmatpush1.xpose.msra.mxu0 0.0
    %1007 = vmatprep.subr.mxu0 0.0
    %1008 = vmatpush1.xpose.msra.mxu0 0.0
    %1009 = vmatprep.subr.mxu0 0.0
    %1010 = vmatpush1.xpose.msra.mxu0 0.0
    %1011 = vmatprep.subr.mxu0 0.0
    %1012 = vmatpush1.xpose.msra.mxu0 0.0
    %1013 = vmatprep.subr.mxu0 0.0
    %1014 = vmatpush1.xpose.msra.mxu0 0.0
    %1015 = vmatprep.subr.mxu0 0.0
    %1016 = vmatpush1.xpose.msra.mxu0 0.0
    %1017 = vmatprep.subr.mxu0 0.0
    %1018 = vmatpush1.xpose.msra.mxu0 0.0
    %1019 = vmatprep.subr.mxu0 0.0
    %1020 = vmatpush1.xpose.msra.mxu0 0.0
    %1021 = vmatprep.subr.mxu0 0.0
    %1022 = vmatpush1.xpose.msra.mxu0 0.0
    %1023 = vmatprep.subr.mxu0 0.0
    %1024 = vmatpush1.xpose.msra.mxu0 0.0
    %1025 = vmatprep.subr.mxu0 0.0
    %1026 = vmatpush1.xpose.msra.mxu0 0.0
    %1027 = vmatprep.subr.mxu0 0.0
    %1028 = vmatpush1.xpose.msra.mxu0 0.0
    %1029 = vmatprep.subr.mxu0 0.0
    %1030 = vmatpush1.xpose.msra.mxu0 0.0
    %1031 = vmatprep.subr.mxu0 0.0
    %1032 = vmatpush1.xpose.msra.mxu0 0.0
    %1033 = vmatprep.subr.mxu0 0.0
    %1034 = vmatpush1.xpose.msra.mxu0 0.0
    %1035 = vmatprep.subr.mxu0 0.0
    %1036 = vmatpush1.xpose.msra.mxu0 0.0
    %1037 = vmatprep.subr.mxu0 0.0
    %1038 = vmatpush1.xpose.msra.mxu0 0.0
    %1039 = vmatprep.subr.mxu0 0.0
    %1040 = vmatpush1.xpose.msra.mxu0 0.0
    %1041 = vmatprep.subr.mxu0 0.0
    %1042 = vmatpush1.xpose.msra.mxu0 0.0
    %1043 = vmatprep.subr.mxu0 0.0
    %1044 = vmatpush1.xpose.msra.mxu0 0.0
    %1045 = vmatprep.subr.mxu0 0.0
    %1046 = vmatpush1.xpose.msra.mxu0 0.0
    %1047 = vmatprep.subr.mxu0 0.0
    %1048 = vmatpush1.xpose.msra.mxu0 0.0
    %1049 = vmatprep.subr.mxu0 0.0
    %1050 = vmatpush1.xpose.msra.mxu0 0.0
    %1051 = vmatprep.subr.mxu0 0.0
    %1052 = vmatpush1.xpose.msra.mxu0 0.0
    %1053 = vmatprep.subr.mxu0 0.0
    %1054 = vmatpush1.xpose.msra.mxu0 0.0
    %1055 = vmatprep.subr.mxu0 0.0
    %1056 = vmatpush1.xpose.msra.mxu0 0.0
    %1057 = vmatprep.mubr.f32.mxu0 0.0
    %1058 = vmatmul.mubr.f32.gmra.mrb[0].mxu0 %v192
    %v1059 = vpop.f32.mrb[0].mxu0
    %v1060 = vadd.f32 0.0, %v1059
    %v1061 = vpop.f32.mrb[0].mxu0
    %1062 = vdwg.mxu0
    %v1064 = vrot.slane %v1060, 1
    %1065 = vrot.lane.b32.xlu0 %v1064, 8
    %v1066 = vpop.permute.xlu0 %1065
    %v1068 = vrot.slane %v1060, 2
    %1069 = vrot.lane.b32.xlu0 %v1068, 16
    %v1070 = vpop.permute.xlu0 %1069
    %v1072 = vrot.slane %v1060, 3
    %1073 = vrot.lane.b32.xlu0 %v1072, 24
    %v1074 = vpop.permute.xlu0 %1073
    %v1076 = vrot.slane %v1060, 4
    %1077 = vrot.lane.b32.xlu0 %v1076, 32
    %v1078 = vpop.permute.xlu0 %1077
    %v1080 = vrot.slane %v1060, 5
    %1081 = vrot.lane.b32.xlu0 %v1080, 40
    %v1082 = vpop.permute.xlu0 %1081
    %v1084 = vrot.slane %v1060, 6
    %1085 = vrot.lane.b32.xlu0 %v1084, 48
    %v1086 = vpop.permute.xlu0 %1085
    %v1088 = vrot.slane %v1060, 7
    %1089 = vrot.lane.b32.xlu0 %v1088, 56
    %v1090 = vpop.permute.xlu0 %1089
    %v1092 = vsel %vm765, %v1060, %v1066
    %v1093 = vsel %vm767, %v1092, %v1070
    %v1094 = vsel %vm769, %v1093, %v1074
    %v1095 = vsel %vm771, %v1094, %v1078
    %v1096 = vsel %vm773, %v1095, %v1082
    %v1097 = vsel %vm775, %v1096, %v1086
    %v1098 = vsel %vm777, %v1097, %v1090
    %1099 = vmatprep.subr.mxu0 0.0
    %1100 = vmatpush1.xpose.msra.mxu0 %v658
    %1101 = vmatprep.subr.mxu0 0.0
    %1102 = vmatpush1.xpose.msra.mxu0 0.0
    %1103 = vmatprep.subr.mxu0 0.0
    %1104 = vmatpush1.xpose.msra.mxu0 0.0
    %1105 = vmatprep.subr.mxu0 0.0
    %1106 = vmatpush1.xpose.msra.mxu0 0.0
    %1107 = vmatprep.subr.mxu0 0.0
    %1108 = vmatpush1.xpose.msra.mxu0 0.0
    %1109 = vmatprep.subr.mxu0 0.0
    %1110 = vmatpush1.xpose.msra.mxu0 0.0
    %1111 = vmatprep.subr.mxu0 0.0
    %1112 = vmatpush1.xpose.msra.mxu0 0.0
    %1113 = vmatprep.subr.mxu0 0.0
    %1114 = vmatpush1.xpose.msra.mxu0 0.0
    %1115 = vmatprep.subr.mxu0 0.0
    %1116 = vmatpush1.xpose.msra.mxu0 0.0
    %1117 = vmatprep.subr.mxu0 0.0
    %1118 = vmatpush1.xpose.msra.mxu0 0.0
    %1119 = vmatprep.subr.mxu0 0.0
    %1120 = vmatpush1.xpose.msra.mxu0 0.0
    %1121 = vmatprep.subr.mxu0 0.0
    %1122 = vmatpush1.xpose.msra.mxu0 0.0
    %1123 = vmatprep.subr.mxu0 0.0
    %1124 = vmatpush1.xpose.msra.mxu0 0.0
    %1125 = vmatprep.subr.mxu0 0.0
    %1126 = vmatpush1.xpose.msra.mxu0 0.0
    %1127 = vmatprep.subr.mxu0 0.0
    %1128 = vmatpush1.xpose.msra.mxu0 0.0
    %1129 = vmatprep.subr.mxu0 0.0
    %1130 = vmatpush1.xpose.msra.mxu0 0.0
    %1131 = vmatprep.subr.mxu0 0.0
    %1132 = vmatpush1.xpose.msra.mxu0 0.0
    %1133 = vmatprep.subr.mxu0 0.0
    %1134 = vmatpush1.xpose.msra.mxu0 0.0
    %1135 = vmatprep.subr.mxu0 0.0
    %1136 = vmatpush1.xpose.msra.mxu0 0.0
    %1137 = vmatprep.subr.mxu0 0.0
    %1138 = vmatpush1.xpose.msra.mxu0 0.0
    %1139 = vmatprep.subr.mxu0 0.0
    %1140 = vmatpush1.xpose.msra.mxu0 0.0
    %1141 = vmatprep.subr.mxu0 0.0
    %1142 = vmatpush1.xpose.msra.mxu0 0.0
    %1143 = vmatprep.subr.mxu0 0.0
    %1144 = vmatpush1.xpose.msra.mxu0 0.0
    %1145 = vmatprep.subr.mxu0 0.0
    %1146 = vmatpush1.xpose.msra.mxu0 0.0
    %1147 = vmatprep.subr.mxu0 0.0
    %1148 = vmatpush1.xpose.msra.mxu0 0.0
    %1149 = vmatprep.subr.mxu0 0.0
    %1150 = vmatpush1.xpose.msra.mxu0 0.0
    %1151 = vmatprep.subr.mxu0 0.0
    %1152 = vmatpush1.xpose.msra.mxu0 0.0
    %1153 = vmatprep.subr.mxu0 0.0
    %1154 = vmatpush1.xpose.msra.mxu0 0.0
    %1155 = vmatprep.subr.mxu0 0.0
    %1156 = vmatpush1.xpose.msra.mxu0 0.0
    %1157 = vmatprep.subr.mxu0 0.0
    %1158 = vmatpush1.xpose.msra.mxu0 0.0
    %1159 = vmatprep.subr.mxu0 0.0
    %1160 = vmatpush1.xpose.msra.mxu0 0.0
    %1161 = vmatprep.subr.mxu0 0.0
    %1162 = vmatpush1.xpose.msra.mxu0 0.0
    %1163 = vmatprep.mubr.f32.mxu0 0.0
    %1164 = vmatmul.mubr.f32.gmra.mrb[0].mxu0 %v192
    %v1165 = vpop.f32.mrb[0].mxu0
    %v1166 = vadd.f32 0.0, %v1165
    %v1167 = vpop.f32.mrb[0].mxu0
    %1168 = vdwg.mxu0
    %v1170 = vrot.slane %v1166, 1
    %1171 = vrot.lane.b32.xlu0 %v1170, 8
    %v1172 = vpop.permute.xlu0 %1171
    %v1174 = vrot.slane %v1166, 2
    %1175 = vrot.lane.b32.xlu0 %v1174, 16
    %v1176 = vpop.permute.xlu0 %1175
    %v1178 = vrot.slane %v1166, 3
    %1179 = vrot.lane.b32.xlu0 %v1178, 24
    %v1180 = vpop.permute.xlu0 %1179
    %v1182 = vrot.slane %v1166, 4
    %1183 = vrot.lane.b32.xlu0 %v1182, 32
    %v1184 = vpop.permute.xlu0 %1183
    %v1186 = vrot.slane %v1166, 5
    %1187 = vrot.lane.b32.xlu0 %v1186, 40
    %v1188 = vpop.permute.xlu0 %1187
    %v1190 = vrot.slane %v1166, 6
    %1191 = vrot.lane.b32.xlu0 %v1190, 48
    %v1192 = vpop.permute.xlu0 %1191
    %v1194 = vrot.slane %v1166, 7
    %1195 = vrot.lane.b32.xlu0 %v1194, 56
    %v1196 = vpop.permute.xlu0 %1195
    %v1198 = vsel %vm765, %v1166, %v1172
    %v1199 = vsel %vm767, %v1198, %v1176
    %v1200 = vsel %vm769, %v1199, %v1180
    %v1201 = vsel %vm771, %v1200, %v1184
    %v1202 = vsel %vm773, %v1201, %v1188
    %v1203 = vsel %vm775, %v1202, %v1192
    %v1204 = vsel %vm777, %v1203, %v1196
    %1206 = vrot.lane.b32.xlu0 %v992, 64
    %v1207 = vpop.permute.xlu0 %1206
    %1210 = vrot.lane.b32.xlu0 %v1204, 64
    %v1211 = vpop.permute.xlu0 %1210
    %vm1213 = vcmask 523264
    %v1214 = vsel %vm1213, %v886, %v1207
    %v1215 = vsel %vm1213, %v1098, %v1211
    %v1218 = vcombine.low %v1214, %v1215
    %v1220 = vunpack.c.l.s4 1966171168
    %v1221 = vunpack.c.0.s8 %v1220
    %v1222 = vlaneseq
    %v1223 = vshrl.u32 %v1222, 7
    %v1224 = vsub.s32 %v1221, %v1223
    %v1225 = vrot.slane %v1218, %v1224
    %v1227 = vunpack.c.l.s4 1966171168
    %v1228 = vunpack.c.0.s8 %v1227
    %v1229 = vlaneseq
    %v1230 = vshrl.u32 %v1229, 7
    %v1231 = vsub.s32 %v1228, %v1230
    %v1232 = vrot.slane %v1225, %v1231
    %v1234 = vlaneseq
    %vm1235 = vcmp.ge.s32.totalorder %v1234, 0
    %vm1236 = vcmp.lt.s32.totalorder %v1234, 256
    %vm1237 = vmand %vm1235, %vm1236
    %1238 = vst.msk [vmem:[%s4] sm:$0x3] %vm1237, %v1232
    %1239 = vmatprep.subr.mxu0 0.0
    %1240 = vmatpush1.xpose.msra.mxu0 %v510
    %1241 = vmatprep.subr.mxu0 0.0
    %1242 = vmatpush1.xpose.msra.mxu0 0.0
    %1243 = vmatprep.subr.mxu0 0.0
    %1244 = vmatpush1.xpose.msra.mxu0 0.0
    %1245 = vmatprep.subr.mxu0 0.0
    %1246 = vmatpush1.xpose.msra.mxu0 0.0
    %1247 = vmatprep.subr.mxu0 0.0
    %1248 = vmatpush1.xpose.msra.mxu0 0.0
    %1249 = vmatprep.subr.mxu0 0.0
    %1250 = vmatpush1.xpose.msra.mxu0 0.0
    %1251 = vmatprep.subr.mxu0 0.0
    %1252 = vmatpush1.xpose.msra.mxu0 0.0
    %1253 = vmatprep.subr.mxu0 0.0
    %1254 = vmatpush1.xpose.msra.mxu0 0.0
    %1255 = vmatprep.subr.mxu0 0.0
    %1256 = vmatpush1.xpose.msra.mxu0 0.0
    %1257 = vmatprep.subr.mxu0 0.0
    %1258 = vmatpush1.xpose.msra.mxu0 0.0
    %1259 = vmatprep.subr.mxu0 0.0
    %1260 = vmatpush1.xpose.msra.mxu0 0.0
    %1261 = vmatprep.subr.mxu0 0.0
    %1262 = vmatpush1.xpose.msra.mxu0 0.0
    %1263 = vmatprep.subr.mxu0 0.0
    %1264 = vmatpush1.xpose.msra.mxu0 0.0
    %1265 = vmatprep.subr.mxu0 0.0
    %1266 = vmatpush1.xpose.msra.mxu0 0.0
    %1267 = vmatprep.subr.mxu0 0.0
    %1268 = vmatpush1.xpose.msra.mxu0 0.0
    %1269 = vmatprep.subr.mxu0 0.0
    %1270 = vmatpush1.xpose.msra.mxu0 0.0
    %1271 = vmatprep.subr.mxu0 0.0
    %1272 = vmatpush1.xpose.msra.mxu0 0.0
    %1273 = vmatprep.subr.mxu0 0.0
    %1274 = vmatpush1.xpose.msra.mxu0 0.0
    %1275 = vmatprep.subr.mxu0 0.0
    %1276 = vmatpush1.xpose.msra.mxu0 0.0
    %1277 = vmatprep.subr.mxu0 0.0
    %1278 = vmatpush1.xpose.msra.mxu0 0.0
    %1279 = vmatprep.subr.mxu0 0.0
    %1280 = vmatpush1.xpose.msra.mxu0 0.0
    %1281 = vmatprep.subr.mxu0 0.0
    %1282 = vmatpush1.xpose.msra.mxu0 0.0
    %1283 = vmatprep.subr.mxu0 0.0
    %1284 = vmatpush1.xpose.msra.mxu0 0.0
    %1285 = vmatprep.subr.mxu0 0.0
    %1286 = vmatpush1.xpose.msra.mxu0 0.0
    %1287 = vmatprep.subr.mxu0 0.0
    %1288 = vmatpush1.xpose.msra.mxu0 0.0
    %1289 = vmatprep.subr.mxu0 0.0
    %1290 = vmatpush1.xpose.msra.mxu0 0.0
    %1291 = vmatprep.subr.mxu0 0.0
    %1292 = vmatpush1.xpose.msra.mxu0 0.0
    %1293 = vmatprep.subr.mxu0 0.0
    %1294 = vmatpush1.xpose.msra.mxu0 0.0
    %1295 = vmatprep.subr.mxu0 0.0
    %1296 = vmatpush1.xpose.msra.mxu0 0.0
    %1297 = vmatprep.subr.mxu0 0.0
    %1298 = vmatpush1.xpose.msra.mxu0 0.0
    %1299 = vmatprep.subr.mxu0 0.0
    %1300 = vmatpush1.xpose.msra.mxu0 0.0
    %1301 = vmatprep.subr.mxu0 0.0
    %1302 = vmatpush1.xpose.msra.mxu0 0.0
    %1303 = vmatprep.mubr.f32.mxu0 0.0
    %1304 = vmatmul.mubr.f32.gmra.mrb[0].mxu0 %v196
    %v1305 = vpop.f32.mrb[0].mxu0
    %v1306 = vadd.f32 0.0, %v1305
    %v1307 = vpop.f32.mrb[0].mxu0
    %1308 = vdwg.mxu0
    %v1310 = vrot.slane %v1306, 1
    %1311 = vrot.lane.b32.xlu0 %v1310, 8
    %v1312 = vpop.permute.xlu0 %1311
    %v1314 = vrot.slane %v1306, 2
    %1315 = vrot.lane.b32.xlu0 %v1314, 16
    %v1316 = vpop.permute.xlu0 %1315
    %v1318 = vrot.slane %v1306, 3
    %1319 = vrot.lane.b32.xlu0 %v1318, 24
    %v1320 = vpop.permute.xlu0 %1319
    %v1322 = vrot.slane %v1306, 4
    %1323 = vrot.lane.b32.xlu0 %v1322, 32
    %v1324 = vpop.permute.xlu0 %1323
    %v1326 = vrot.slane %v1306, 5
    %1327 = vrot.lane.b32.xlu0 %v1326, 40
    %v1328 = vpop.permute.xlu0 %1327
    %v1330 = vrot.slane %v1306, 6
    %1331 = vrot.lane.b32.xlu0 %v1330, 48
    %v1332 = vpop.permute.xlu0 %1331
    %v1334 = vrot.slane %v1306, 7
    %1335 = vrot.lane.b32.xlu0 %v1334, 56
    %v1336 = vpop.permute.xlu0 %1335
    %v1338 = vsel %vm765, %v1306, %v1312
    %v1339 = vsel %vm767, %v1338, %v1316
    %v1340 = vsel %vm769, %v1339, %v1320
    %v1341 = vsel %vm771, %v1340, %v1324
    %v1342 = vsel %vm773, %v1341, %v1328
    %v1343 = vsel %vm775, %v1342, %v1332
    %v1344 = vsel %vm777, %v1343, %v1336
    %s1345 = scalar_lea.vmem %s3, 1
    %1346 = vst.msk [vmem:[%s1345] sm:$0x1] %vm779, %v1344
    %1347 = vmatprep.subr.mxu0 0.0
    %1348 = vmatpush1.xpose.msra.mxu0 %v512
    %1349 = vmatprep.subr.mxu0 0.0
    %1350 = vmatpush1.xpose.msra.mxu0 0.0
    %1351 = vmatprep.subr.mxu0 0.0
    %1352 = vmatpush1.xpose.msra.mxu0 0.0
    %1353 = vmatprep.subr.mxu0 0.0
    %1354 = vmatpush1.xpose.msra.mxu0 0.0
    %1355 = vmatprep.subr.mxu0 0.0
    %1356 = vmatpush1.xpose.msra.mxu0 0.0
    %1357 = vmatprep.subr.mxu0 0.0
    %1358 = vmatpush1.xpose.msra.mxu0 0.0
    %1359 = vmatprep.subr.mxu0 0.0
    %1360 = vmatpush1.xpose.msra.mxu0 0.0
    %1361 = vmatprep.subr.mxu0 0.0
    %1362 = vmatpush1.xpose.msra.mxu0 0.0
    %1363 = vmatprep.subr.mxu0 0.0
    %1364 = vmatpush1.xpose.msra.mxu0 0.0
    %1365 = vmatprep.subr.mxu0 0.0
    %1366 = vmatpush1.xpose.msra.mxu0 0.0
    %1367 = vmatprep.subr.mxu0 0.0
    %1368 = vmatpush1.xpose.msra.mxu0 0.0
    %1369 = vmatprep.subr.mxu0 0.0
    %1370 = vmatpush1.xpose.msra.mxu0 0.0
    %1371 = vmatprep.subr.mxu0 0.0
    %1372 = vmatpush1.xpose.msra.mxu0 0.0
    %1373 = vmatprep.subr.mxu0 0.0
    %1374 = vmatpush1.xpose.msra.mxu0 0.0
    %1375 = vmatprep.subr.mxu0 0.0
    %1376 = vmatpush1.xpose.msra.mxu0 0.0
    %1377 = vmatprep.subr.mxu0 0.0
    %1378 = vmatpush1.xpose.msra.mxu0 0.0
    %1379 = vmatprep.subr.mxu0 0.0
    %1380 = vmatpush1.xpose.msra.mxu0 0.0
    %1381 = vmatprep.subr.mxu0 0.0
    %1382 = vmatpush1.xpose.msra.mxu0 0.0
    %1383 = vmatprep.subr.mxu0 0.0
    %1384 = vmatpush1.xpose.msra.mxu0 0.0
    %1385 = vmatprep.subr.mxu0 0.0
    %1386 = vmatpush1.xpose.msra.mxu0 0.0
    %1387 = vmatprep.subr.mxu0 0.0
    %1388 = vmatpush1.xpose.msra.mxu0 0.0
    %1389 = vmatprep.subr.mxu0 0.0
    %1390 = vmatpush1.xpose.msra.mxu0 0.0
    %1391 = vmatprep.subr.mxu0 0.0
    %1392 = vmatpush1.xpose.msra.mxu0 0.0
    %1393 = vmatprep.subr.mxu0 0.0
    %1394 = vmatpush1.xpose.msra.mxu0 0.0
    %1395 = vmatprep.subr.mxu0 0.0
    %1396 = vmatpush1.xpose.msra.mxu0 0.0
    %1397 = vmatprep.subr.mxu0 0.0
    %1398 = vmatpush1.xpose.msra.mxu0 0.0
    %1399 = vmatprep.subr.mxu0 0.0
    %1400 = vmatpush1.xpose.msra.mxu0 0.0
    %1401 = vmatprep.subr.mxu0 0.0
    %1402 = vmatpush1.xpose.msra.mxu0 0.0
    %1403 = vmatprep.subr.mxu0 0.0
    %1404 = vmatpush1.xpose.msra.mxu0 0.0
    %1405 = vmatprep.subr.mxu0 0.0
    %1406 = vmatpush1.xpose.msra.mxu0 0.0
    %1407 = vmatprep.subr.mxu0 0.0
    %1408 = vmatpush1.xpose.msra.mxu0 0.0
    %1409 = vmatprep.subr.mxu0 0.0
    %1410 = vmatpush1.xpose.msra.mxu0 0.0
    %1411 = vmatprep.mubr.f32.mxu0 0.0
    %1412 = vmatmul.mubr.f32.gmra.mrb[0].mxu0 %v198
    %v1413 = vpop.f32.mrb[0].mxu0
    %v1414 = vadd.f32 0.0, %v1413
    %v1415 = vpop.f32.mrb[0].mxu0
    %1416 = vdwg.mxu0
    %v1418 = vrot.slane %v1414, 1
    %1419 = vrot.lane.b32.xlu0 %v1418, 8
    %v1420 = vpop.permute.xlu0 %1419
    %v1422 = vrot.slane %v1414, 2
    %1423 = vrot.lane.b32.xlu0 %v1422, 16
    %v1424 = vpop.permute.xlu0 %1423
    %v1426 = vrot.slane %v1414, 3
    %1427 = vrot.lane.b32.xlu0 %v1426, 24
    %v1428 = vpop.permute.xlu0 %1427
    %v1430 = vrot.slane %v1414, 4
    %1431 = vrot.lane.b32.xlu0 %v1430, 32
    %v1432 = vpop.permute.xlu0 %1431
    %v1434 = vrot.slane %v1414, 5
    %1435 = vrot.lane.b32.xlu0 %v1434, 40
    %v1436 = vpop.permute.xlu0 %1435
    %v1438 = vrot.slane %v1414, 6
    %1439 = vrot.lane.b32.xlu0 %v1438, 48
    %v1440 = vpop.permute.xlu0 %1439
    %v1442 = vrot.slane %v1414, 7
    %1443 = vrot.lane.b32.xlu0 %v1442, 56
    %v1444 = vpop.permute.xlu0 %1443
    %v1446 = vsel %vm765, %v1414, %v1420
    %v1447 = vsel %vm767, %v1446, %v1424
    %v1448 = vsel %vm769, %v1447, %v1428
    %v1449 = vsel %vm771, %v1448, %v1432
    %v1450 = vsel %vm773, %v1449, %v1436
    %v1451 = vsel %vm775, %v1450, %v1440
    %v1452 = vsel %vm777, %v1451, %v1444
    %1453 = vmatprep.subr.mxu0 0.0
    %1454 = vmatpush1.xpose.msra.mxu0 %v587
    %1455 = vmatprep.subr.mxu0 0.0
    %1456 = vmatpush1.xpose.msra.mxu0 0.0
    %1457 = vmatprep.subr.mxu0 0.0
    %1458 = vmatpush1.xpose.msra.mxu0 0.0
    %1459 = vmatprep.subr.mxu0 0.0
    %1460 = vmatpush1.xpose.msra.mxu0 0.0
    %1461 = vmatprep.subr.mxu0 0.0
    %1462 = vmatpush1.xpose.msra.mxu0 0.0
    %1463 = vmatprep.subr.mxu0 0.0
    %1464 = vmatpush1.xpose.msra.mxu0 0.0
    %1465 = vmatprep.subr.mxu0 0.0
    %1466 = vmatpush1.xpose.msra.mxu0 0.0
    %1467 = vmatprep.subr.mxu0 0.0
    %1468 = vmatpush1.xpose.msra.mxu0 0.0
    %1469 = vmatprep.subr.mxu0 0.0
    %1470 = vmatpush1.xpose.msra.mxu0 0.0
    %1471 = vmatprep.subr.mxu0 0.0
    %1472 = vmatpush1.xpose.msra.mxu0 0.0
    %1473 = vmatprep.subr.mxu0 0.0
    %1474 = vmatpush1.xpose.msra.mxu0 0.0
    %1475 = vmatprep.subr.mxu0 0.0
    %1476 = vmatpush1.xpose.msra.mxu0 0.0
    %1477 = vmatprep.subr.mxu0 0.0
    %1478 = vmatpush1.xpose.msra.mxu0 0.0
    %1479 = vmatprep.subr.mxu0 0.0
    %1480 = vmatpush1.xpose.msra.mxu0 0.0
    %1481 = vmatprep.subr.mxu0 0.0
    %1482 = vmatpush1.xpose.msra.mxu0 0.0
    %1483 = vmatprep.subr.mxu0 0.0
    %1484 = vmatpush1.xpose.msra.mxu0 0.0
    %1485 = vmatprep.subr.mxu0 0.0
    %1486 = vmatpush1.xpose.msra.mxu0 0.0
    %1487 = vmatprep.subr.mxu0 0.0
    %1488 = vmatpush1.xpose.msra.mxu0 0.0
    %1489 = vmatprep.subr.mxu0 0.0
    %1490 = vmatpush1.xpose.msra.mxu0 0.0
    %1491 = vmatprep.subr.mxu0 0.0
    %1492 = vmatpush1.xpose.msra.mxu0 0.0
    %1493 = vmatprep.subr.mxu0 0.0
    %1494 = vmatpush1.xpose.msra.mxu0 0.0
    %1495 = vmatprep.subr.mxu0 0.0
    %1496 = vmatpush1.xpose.msra.mxu0 0.0
    %1497 = vmatprep.subr.mxu0 0.0
    %1498 = vmatpush1.xpose.msra.mxu0 0.0
    %1499 = vmatprep.subr.mxu0 0.0
    %1500 = vmatpush1.xpose.msra.mxu0 0.0
    %1501 = vmatprep.subr.mxu0 0.0
    %1502 = vmatpush1.xpose.msra.mxu0 0.0
    %1503 = vmatprep.subr.mxu0 0.0
    %1504 = vmatpush1.xpose.msra.mxu0 0.0
    %1505 = vmatprep.subr.mxu0 0.0
    %1506 = vmatpush1.xpose.msra.mxu0 0.0
    %1507 = vmatprep.subr.mxu0 0.0
    %1508 = vmatpush1.xpose.msra.mxu0 0.0
    %1509 = vmatprep.subr.mxu0 0.0
    %1510 = vmatpush1.xpose.msra.mxu0 0.0
    %1511 = vmatprep.subr.mxu0 0.0
    %1512 = vmatpush1.xpose.msra.mxu0 0.0
    %1513 = vmatprep.subr.mxu0 0.0
    %1514 = vmatpush1.xpose.msra.mxu0 0.0
    %1515 = vmatprep.subr.mxu0 0.0
    %1516 = vmatpush1.xpose.msra.mxu0 0.0
    %1517 = vmatprep.mubr.f32.mxu0 0.0
    %1518 = vmatmul.mubr.f32.gmra.mrb[0].mxu0 %v198
    %v1519 = vpop.f32.mrb[0].mxu0
    %v1520 = vadd.f32 0.0, %v1519
    %v1521 = vpop.f32.mrb[0].mxu0
    %1522 = vdwg.mxu0
    %v1524 = vrot.slane %v1520, 1
    %1525 = vrot.lane.b32.xlu0 %v1524, 8
    %v1526 = vpop.permute.xlu0 %1525
    %v1528 = vrot.slane %v1520, 2
    %1529 = vrot.lane.b32.xlu0 %v1528, 16
    %v1530 = vpop.permute.xlu0 %1529
    %v1532 = vrot.slane %v1520, 3
    %1533 = vrot.lane.b32.xlu0 %v1532, 24
    %v1534 = vpop.permute.xlu0 %1533
    %v1536 = vrot.slane %v1520, 4
    %1537 = vrot.lane.b32.xlu0 %v1536, 32
    %v1538 = vpop.permute.xlu0 %1537
    %v1540 = vrot.slane %v1520, 5
    %1541 = vrot.lane.b32.xlu0 %v1540, 40
    %v1542 = vpop.permute.xlu0 %1541
    %v1544 = vrot.slane %v1520, 6
    %1545 = vrot.lane.b32.xlu0 %v1544, 48
    %v1546 = vpop.permute.xlu0 %1545
    %v1548 = vrot.slane %v1520, 7
    %1549 = vrot.lane.b32.xlu0 %v1548, 56
    %v1550 = vpop.permute.xlu0 %1549
    %v1552 = vsel %vm765, %v1520, %v1526
    %v1553 = vsel %vm767, %v1552, %v1530
    %v1554 = vsel %vm769, %v1553, %v1534
    %v1555 = vsel %vm771, %v1554, %v1538
    %v1556 = vsel %vm773, %v1555, %v1542
    %v1557 = vsel %vm775, %v1556, %v1546
    %v1558 = vsel %vm777, %v1557, %v1550
    %1559 = vmatprep.subr.mxu0 0.0
    %1560 = vmatpush1.xpose.msra.mxu0 %v589
    %1561 = vmatprep.subr.mxu0 0.0
    %1562 = vmatpush1.xpose.msra.mxu0 0.0
    %1563 = vmatprep.subr.mxu0 0.0
    %1564 = vmatpush1.xpose.msra.mxu0 0.0
    %1565 = vmatprep.subr.mxu0 0.0
    %1566 = vmatpush1.xpose.msra.mxu0 0.0
    %1567 = vmatprep.subr.mxu0 0.0
    %1568 = vmatpush1.xpose.msra.mxu0 0.0
    %1569 = vmatprep.subr.mxu0 0.0
    %1570 = vmatpush1.xpose.msra.mxu0 0.0
    %1571 = vmatprep.subr.mxu0 0.0
    %1572 = vmatpush1.xpose.msra.mxu0 0.0
    %1573 = vmatprep.subr.mxu0 0.0
    %1574 = vmatpush1.xpose.msra.mxu0 0.0
    %1575 = vmatprep.subr.mxu0 0.0
    %1576 = vmatpush1.xpose.msra.mxu0 0.0
    %1577 = vmatprep.subr.mxu0 0.0
    %1578 = vmatpush1.xpose.msra.mxu0 0.0
    %1579 = vmatprep.subr.mxu0 0.0
    %1580 = vmatpush1.xpose.msra.mxu0 0.0
    %1581 = vmatprep.subr.mxu0 0.0
    %1582 = vmatpush1.xpose.msra.mxu0 0.0
    %1583 = vmatprep.subr.mxu0 0.0
    %1584 = vmatpush1.xpose.msra.mxu0 0.0
    %1585 = vmatprep.subr.mxu0 0.0
    %1586 = vmatpush1.xpose.msra.mxu0 0.0
    %1587 = vmatprep.subr.mxu0 0.0
    %1588 = vmatpush1.xpose.msra.mxu0 0.0
    %1589 = vmatprep.subr.mxu0 0.0
    %1590 = vmatpush1.xpose.msra.mxu0 0.0
    %1591 = vmatprep.subr.mxu0 0.0
    %1592 = vmatpush1.xpose.msra.mxu0 0.0
    %1593 = vmatprep.subr.mxu0 0.0
    %1594 = vmatpush1.xpose.msra.mxu0 0.0
    %1595 = vmatprep.subr.mxu0 0.0
    %1596 = vmatpush1.xpose.msra.mxu0 0.0
    %1597 = vmatprep.subr.mxu0 0.0
    %1598 = vmatpush1.xpose.msra.mxu0 0.0
    %1599 = vmatprep.subr.mxu0 0.0
    %1600 = vmatpush1.xpose.msra.mxu0 0.0
    %1601 = vmatprep.subr.mxu0 0.0
    %1602 = vmatpush1.xpose.msra.mxu0 0.0
    %1603 = vmatprep.subr.mxu0 0.0
    %1604 = vmatpush1.xpose.msra.mxu0 0.0
    %1605 = vmatprep.subr.mxu0 0.0
    %1606 = vmatpush1.xpose.msra.mxu0 0.0
    %1607 = vmatprep.subr.mxu0 0.0
    %1608 = vmatpush1.xpose.msra.mxu0 0.0
    %1609 = vmatprep.subr.mxu0 0.0
    %1610 = vmatpush1.xpose.msra.mxu0 0.0
    %1611 = vmatprep.subr.mxu0 0.0
    %1612 = vmatpush1.xpose.msra.mxu0 0.0
    %1613 = vmatprep.subr.mxu0 0.0
    %1614 = vmatpush1.xpose.msra.mxu0 0.0
    %1615 = vmatprep.subr.mxu0 0.0
    %1616 = vmatpush1.xpose.msra.mxu0 0.0
    %1617 = vmatprep.subr.mxu0 0.0
    %1618 = vmatpush1.xpose.msra.mxu0 0.0
    %1619 = vmatprep.subr.mxu0 0.0
    %1620 = vmatpush1.xpose.msra.mxu0 0.0
    %1621 = vmatprep.subr.mxu0 0.0
    %1622 = vmatpush1.xpose.msra.mxu0 0.0
    %1623 = vmatprep.mubr.f32.mxu0 0.0
    %1624 = vmatmul.mubr.f32.gmra.mrb[0].mxu0 %v198
    %v1625 = vpop.f32.mrb[0].mxu0
    %v1626 = vadd.f32 0.0, %v1625
    %v1627 = vpop.f32.mrb[0].mxu0
    %1628 = vdwg.mxu0
    %v1630 = vrot.slane %v1626, 1
    %1631 = vrot.lane.b32.xlu0 %v1630, 8
    %v1632 = vpop.permute.xlu0 %1631
    %v1634 = vrot.slane %v1626, 2
    %1635 = vrot.lane.b32.xlu0 %v1634, 16
    %v1636 = vpop.permute.xlu0 %1635
    %v1638 = vrot.slane %v1626, 3
    %1639 = vrot.lane.b32.xlu0 %v1638, 24
    %v1640 = vpop.permute.xlu0 %1639
    %v1642 = vrot.slane %v1626, 4
    %1643 = vrot.lane.b32.xlu0 %v1642, 32
    %v1644 = vpop.permute.xlu0 %1643
    %v1646 = vrot.slane %v1626, 5
    %1647 = vrot.lane.b32.xlu0 %v1646, 40
    %v1648 = vpop.permute.xlu0 %1647
    %v1650 = vrot.slane %v1626, 6
    %1651 = vrot.lane.b32.xlu0 %v1650, 48
    %v1652 = vpop.permute.xlu0 %1651
    %v1654 = vrot.slane %v1626, 7
    %1655 = vrot.lane.b32.xlu0 %v1654, 56
    %v1656 = vpop.permute.xlu0 %1655
    %v1658 = vsel %vm765, %v1626, %v1632
    %v1659 = vsel %vm767, %v1658, %v1636
    %v1660 = vsel %vm769, %v1659, %v1640
    %v1661 = vsel %vm771, %v1660, %v1644
    %v1662 = vsel %vm773, %v1661, %v1648
    %v1663 = vsel %vm775, %v1662, %v1652
    %v1664 = vsel %vm777, %v1663, %v1656
    %1665 = vmatprep.subr.mxu0 0.0
    %1666 = vmatpush1.xpose.msra.mxu0 %v663
    %1667 = vmatprep.subr.mxu0 0.0
    %1668 = vmatpush1.xpose.msra.mxu0 0.0
    %1669 = vmatprep.subr.mxu0 0.0
    %1670 = vmatpush1.xpose.msra.mxu0 0.0
    %1671 = vmatprep.subr.mxu0 0.0
    %1672 = vmatpush1.xpose.msra.mxu0 0.0
    %1673 = vmatprep.subr.mxu0 0.0
    %1674 = vmatpush1.xpose.msra.mxu0 0.0
    %1675 = vmatprep.subr.mxu0 0.0
    %1676 = vmatpush1.xpose.msra.mxu0 0.0
    %1677 = vmatprep.subr.mxu0 0.0
    %1678 = vmatpush1.xpose.msra.mxu0 0.0
    %1679 = vmatprep.subr.mxu0 0.0
    %1680 = vmatpush1.xpose.msra.mxu0 0.0
    %1681 = vmatprep.subr.mxu0 0.0
    %1682 = vmatpush1.xpose.msra.mxu0 0.0
    %1683 = vmatprep.subr.mxu0 0.0
    %1684 = vmatpush1.xpose.msra.mxu0 0.0
    %1685 = vmatprep.subr.mxu0 0.0
    %1686 = vmatpush1.xpose.msra.mxu0 0.0
    %1687 = vmatprep.subr.mxu0 0.0
    %1688 = vmatpush1.xpose.msra.mxu0 0.0
    %1689 = vmatprep.subr.mxu0 0.0
    %1690 = vmatpush1.xpose.msra.mxu0 0.0
    %1691 = vmatprep.subr.mxu0 0.0
    %1692 = vmatpush1.xpose.msra.mxu0 0.0
    %1693 = vmatprep.subr.mxu0 0.0
    %1694 = vmatpush1.xpose.msra.mxu0 0.0
    %1695 = vmatprep.subr.mxu0 0.0
    %1696 = vmatpush1.xpose.msra.mxu0 0.0
    %1697 = vmatprep.subr.mxu0 0.0
    %1698 = vmatpush1.xpose.msra.mxu0 0.0
    %1699 = vmatprep.subr.mxu0 0.0
    %1700 = vmatpush1.xpose.msra.mxu0 0.0
    %1701 = vmatprep.subr.mxu0 0.0
    %1702 = vmatpush1.xpose.msra.mxu0 0.0
    %1703 = vmatprep.subr.mxu0 0.0
    %1704 = vmatpush1.xpose.msra.mxu0 0.0
    %1705 = vmatprep.subr.mxu0 0.0
    %1706 = vmatpush1.xpose.msra.mxu0 0.0
    %1707 = vmatprep.subr.mxu0 0.0
    %1708 = vmatpush1.xpose.msra.mxu0 0.0
    %1709 = vmatprep.subr.mxu0 0.0
    %1710 = vmatpush1.xpose.msra.mxu0 0.0
    %1711 = vmatprep.subr.mxu0 0.0
    %1712 = vmatpush1.xpose.msra.mxu0 0.0
    %1713 = vmatprep.subr.mxu0 0.0
    %1714 = vmatpush1.xpose.msra.mxu0 0.0
    %1715 = vmatprep.subr.mxu0 0.0
    %1716 = vmatpush1.xpose.msra.mxu0 0.0
    %1717 = vmatprep.subr.mxu0 0.0
    %1718 = vmatpush1.xpose.msra.mxu0 0.0
    %1719 = vmatprep.subr.mxu0 0.0
    %1720 = vmatpush1.xpose.msra.mxu0 0.0
    %1721 = vmatprep.subr.mxu0 0.0
    %1722 = vmatpush1.xpose.msra.mxu0 0.0
    %1723 = vmatprep.subr.mxu0 0.0
    %1724 = vmatpush1.xpose.msra.mxu0 0.0
    %1725 = vmatprep.subr.mxu0 0.0
    %1726 = vmatpush1.xpose.msra.mxu0 0.0
    %1727 = vmatprep.subr.mxu0 0.0
    %1728 = vmatpush1.xpose.msra.mxu0 0.0
    %1729 = vmatprep.mubr.f32.mxu0 0.0
    %1730 = vmatmul.mubr.f32.gmra.mrb[0].mxu0 %v198
    %v1731 = vpop.f32.mrb[0].mxu0
    %v1732 = vadd.f32 0.0, %v1731
    %v1733 = vpop.f32.mrb[0].mxu0
    %1734 = vdwg.mxu0
    %v1736 = vrot.slane %v1732, 1
    %1737 = vrot.lane.b32.xlu0 %v1736, 8
    %v1738 = vpop.permute.xlu0 %1737
    %v1740 = vrot.slane %v1732, 2
    %1741 = vrot.lane.b32.xlu0 %v1740, 16
    %v1742 = vpop.permute.xlu0 %1741
    %v1744 = vrot.slane %v1732, 3
    %1745 = vrot.lane.b32.xlu0 %v1744, 24
    %v1746 = vpop.permute.xlu0 %1745
    %v1748 = vrot.slane %v1732, 4
    %1749 = vrot.lane.b32.xlu0 %v1748, 32
    %v1750 = vpop.permute.xlu0 %1749
    %v1752 = vrot.slane %v1732, 5
    %1753 = vrot.lane.b32.xlu0 %v1752, 40
    %v1754 = vpop.permute.xlu0 %1753
    %v1756 = vrot.slane %v1732, 6
    %1757 = vrot.lane.b32.xlu0 %v1756, 48
    %v1758 = vpop.permute.xlu0 %1757
    %v1760 = vrot.slane %v1732, 7
    %1761 = vrot.lane.b32.xlu0 %v1760, 56
    %v1762 = vpop.permute.xlu0 %1761
    %v1764 = vsel %vm765, %v1732, %v1738
    %v1765 = vsel %vm767, %v1764, %v1742
    %v1766 = vsel %vm769, %v1765, %v1746
    %v1767 = vsel %vm771, %v1766, %v1750
    %v1768 = vsel %vm773, %v1767, %v1754
    %v1769 = vsel %vm775, %v1768, %v1758
    %v1770 = vsel %vm777, %v1769, %v1762
    %1772 = vrot.lane.b32.xlu0 %v1558, 64
    %v1773 = vpop.permute.xlu0 %1772
    %1776 = vrot.lane.b32.xlu0 %v1770, 64
    %v1777 = vpop.permute.xlu0 %1776
    %v1779 = vsel %vm1213, %v1452, %v1773
    %v1780 = vsel %vm1213, %v1664, %v1777
    %v1783 = vcombine.low %v1779, %v1780
    %v1785 = vunpack.c.l.s4 1966171168
    %v1786 = vunpack.c.0.s8 %v1785
    %v1787 = vlaneseq
    %v1788 = vshrl.u32 %v1787, 7
    %v1789 = vsub.s32 %v1786, %v1788
    %v1790 = vrot.slane %v1783, %v1789
    %v1792 = vunpack.c.l.s4 1966171168
    %v1793 = vunpack.c.0.s8 %v1792
    %v1794 = vlaneseq
    %v1795 = vshrl.u32 %v1794, 7
    %v1796 = vsub.s32 %v1793, %v1795
    %v1797 = vrot.slane %v1790, %v1796
    %s1799 = scalar_lea.vmem %s4, 2
    %1800 = vst.msk [vmem:[%s1799] sm:$0x3] %vm1237, %v1797
    // Predicated region
    $region26: #{scorer_forward.1} parent=1 // pred_check
      _
    $region27: #{scorer_forward.1} parent=1 // pred_check_branch
      %1802 = sbr.rel (0) target = $region29
    $region28: #{scorer_forward.1} parent=1 // pred_region
      _
    $region29: #{scorer_forward.1} parent=1 // pred_fallthru
      _
    // Predicated region
    $region30: #{scorer_forward.1} parent=1 // pred_check
      _
    $region31: #{scorer_forward.1} parent=1 // pred_check_branch
      %1804 = sbr.rel (0) target = $region33
    $region32: #{scorer_forward.1} parent=1 // pred_region
      _
    $region33: #{scorer_forward.1} parent=1 // pred_fallthru
      _
    // Predicated region
    $region34: #{scorer_forward.1} parent=1 // pred_check
      _
    $region35: #{scorer_forward.1} parent=1 // pred_check_branch
      %1806 = sbr.rel (0) target = $region37
    $region36: #{scorer_forward.1} parent=1 // pred_region
      _
    $region37: #{scorer_forward.1} parent=1 // pred_fallthru
      _
    // Predicated region
    $region38: #{scorer_forward.1} parent=1 // pred_check
      _
    $region39: #{scorer_forward.1} parent=1 // pred_check_branch
      %1808 = sbr.rel (0) target = $region41
    $region40: #{scorer_forward.1} parent=1 // pred_region
      _
    $region41: #{scorer_forward.1} parent=1 // pred_fallthru
      _
    %1809 = vsyncpa [#allocation3], 1
    %1810 = vsyncpa [#allocation5], 1

</llo_original>
